<compile_context>
chip_gen: v5e
topology: v5e:2x2
jax: 0.10.0
libtpu: 0.0.40
codegen_flags: <defaults>
</compile_context>

<pallas_src>
import numpy as np
import jax
import jax.numpy as jnp
from jax import lax
from jax.experimental import pallas as pl
from jax.experimental.pallas import tpu as pltpu

# ----------------------------- small synthetic BERT config -----------------------------
KMER = 3
BATCH = 2
SEQ_CHARS = 16                         # raw DNA string length
NUM_KMERS = SEQ_CHARS + 1 - KMER       # 14
SEQ = NUM_KMERS + 2                    # +[CLS]+[SEP] -> 16
HIDDEN = 64
NUM_HEADS = 2
HEAD_DIM = HIDDEN // NUM_HEADS
INTER = 128
NUM_LAYERS = 2
VOCAB = 5 + 4 ** KMER                  # PAD/UNK/CLS/SEP/MASK + 4^kmer kmers
MAX_POS = 64
LN_EPS = 1e-12


# ----------------------------- in-kernel helpers -----------------------------
def _layernorm(x, gamma, beta):
    mu = jnp.mean(x, axis=-1, keepdims=True)
    var = jnp.mean((x - mu) ** 2, axis=-1, keepdims=True)
    return (x - mu) * lax.rsqrt(var + LN_EPS) * gamma + beta


# ----------------------------- fused Pallas kernel -----------------------------
def fused_bert_kernel(emb_ref, mask_ref, embg_ref, embb_ref,
                      wqkv_ref, bqkv_ref, wo_ref, bo_ref, ln1g_ref, ln1b_ref,
                      w1_ref, b1_ref, w2_ref, b2_ref, ln2g_ref, ln2b_ref,
                      poolw_ref, poolb_ref,
                      hid_ref, pooled_ref, attn_ref):
    # (BS, BS) additive mask: block-diagonal (-1e9 cross-batch) + HF padding mask within batch.
    # Must stay f32: cross-batch masking relies on exp(-1e9 - m) underflowing to exactly 0.
    mask = mask_ref[...]

    # embedding LayerNorm (f32)
    h = _layernorm(emb_ref[...], embg_ref[...], embb_ref[...])          # (BS, H) f32

    for l in range(NUM_LAYERS):                                          # static unroll
        x = h
        xb = x.astype(jnp.bfloat16)

        # fused QKV projection: (BS, H) @ (H, 3H) -> (BS, 3H); 1/sqrt(Dh) already folded into
        # the q slice of wqkv/bqkv in the wrapper.
        qkv = jnp.dot(xb, wqkv_ref[l], preferred_element_type=jnp.float32) + bqkv_ref[l]
        qkv_b = qkv.astype(jnp.bfloat16)                                  # cast once
        q = qkv_b[:, 0 * HIDDEN:1 * HIDDEN]
        k = qkv_b[:, 1 * HIDDEN:2 * HIDDEN]
        v = qkv_b[:, 2 * HIDDEN:3 * HIDDEN]

        wo_l = wo_ref[l]                                                  # (H, H) bf16
        attn_out = None
        for hh in range(NUM_HEADS):                                       # static unroll
            lo = hh * HEAD_DIM
            qh = q[:, lo:lo + HEAD_DIM]                                   # (BS, Dh) bf16
            kh = k[:, lo:lo + HEAD_DIM]
            vh = v[:, lo:lo + HEAD_DIM]
            # batch-folded scores; cross-batch entries are masked to -1e9 -> exp underflows to 0
            scores = lax.dot_general(qh, kh, (((1,), (1,)), ((), ())),
                                     preferred_element_type=jnp.float32) + mask
            m = jnp.max(scores, axis=-1, keepdims=True)
            e = jnp.exp(scores - m)
            probs = e * pl.reciprocal(jnp.sum(e, axis=-1, keepdims=True), approx=True)
            # lane-dense whole-block store; per-batch diagonal (S,S) blocks extracted in wrapper
            attn_ref[l, hh] = probs
            ctx_h = jnp.dot(probs.astype(jnp.bfloat16), vh,
                            preferred_element_type=jnp.float32)           # (BS, Dh) f32
            # per-head contribution to the output projection (wo split along K), f32 accumulate
            part = jnp.dot(ctx_h.astype(jnp.bfloat16), wo_l[lo:lo + HEAD_DIM, :],
                           preferred_element_type=jnp.float32)
            attn_out = part if attn_out is None else attn_out + part
        attn_out = attn_out + bo_ref[l]

        h1 = _layernorm(attn_out + x, ln1g_ref[l], ln1b_ref[l])

        inter = jnp.dot(h1.astype(jnp.bfloat16), w1_ref[l],
                        preferred_element_type=jnp.float32) + b1_ref[l]
        # TODO(synk): HF BERT default "gelu" is erf-based; tanh approximation used for robust TPU lowering.
        inter = jax.nn.gelu(inter, approximate=True)
        ffn = jnp.dot(inter.astype(jnp.bfloat16), w2_ref[l],
                      preferred_element_type=jnp.float32) + b2_ref[l]

        h = _layernorm(ffn + h1, ln2g_ref[l], ln2b_ref[l])

    hid_ref[...] = h

    # pooler on all BS rows (one MXU pass either way); wrapper selects the CLS rows.
    pooled_ref[...] = jnp.tanh(
        jnp.dot(h.astype(jnp.bfloat16), poolw_ref[...],
                preferred_element_type=jnp.float32) + poolb_ref[...])


# ----------------------------- pallas_call wrapper -----------------------------
def _full_spec(shape):
    nd = len(shape)
    return pl.BlockSpec(shape, lambda i, _nd=nd: (0,) * _nd)


def _prep_weights(params):
    """Stack per-layer weights (leading NUM_LAYERS dim), fold 1/sqrt(Dh) into wq/bq,
    fuse QKV, pre-cast MXU operands to bf16."""
    scale = 1.0 / np.sqrt(float(HEAD_DIM))
    wqkv, bqkv = [], []
    wo, bo, ln1g, ln1b, w1, b1, w2, b2, ln2g, ln2b = ([] for _ in range(10))
    for lw in params["layers"]:
        wqkv.append(jnp.concatenate([lw["wq"] * scale, lw["wk"], lw["wv"]], axis=-1))
        bqkv.append(jnp.concatenate([lw["bq"] * scale, lw["bk"], lw["bv"]], axis=-1))
        wo.append(lw["wo"]); bo.append(lw["bo"])
        ln1g.append(lw["ln1g"]); ln1b.append(lw["ln1b"])
        w1.append(lw["w1"]); b1.append(lw["b1"])
        w2.append(lw["w2"]); b2.append(lw["b2"])
        ln2g.append(lw["ln2g"]); ln2b.append(lw["ln2b"])
    st = lambda xs: jnp.stack(xs, axis=0)
    return [
        st(wqkv).astype(jnp.bfloat16), st(bqkv),
        st(wo).astype(jnp.bfloat16), st(bo), st(ln1g), st(ln1b),
        st(w1).astype(jnp.bfloat16), st(b1),
        st(w2).astype(jnp.bfloat16), st(b2), st(ln2g), st(ln2b),
    ]


def bert_forward(params, input_ids, token_type_ids, attention_mask):
    B, S = input_ids.shape
    BS = B * S

    # embedding gathers are glue (tiny tables, no clean Pallas gather needed)
    word = params["word_emb"][input_ids]
    pos = params["pos_emb"][jnp.arange(S)][None, :, :]
    tok = params["tok_emb"][token_type_ids]
    emb = (word + pos + tok).astype(jnp.float32).reshape(BS, HIDDEN)

    # batch-folded additive attention mask (BS, BS), f32
    att = attention_mask.astype(jnp.float32)                              # (B, S)
    key_add = ((1.0 - att) * -10000.0).reshape(BS)                        # per key column
    same_batch = jnp.kron(jnp.eye(B, dtype=jnp.float32),
                          jnp.ones((S, S), jnp.float32))                  # (BS, BS)
    full_mask = jnp.where(same_batch > 0, key_add[None, :], -1e9)

    stacked = _prep_weights(params)
    pool_w = params["pool_w"].astype(jnp.bfloat16)

    inputs = ([emb, full_mask, params["emb_ln_g"], params["emb_ln_b"]]
              + stacked + [pool_w, params["pool_b"]])

    out_shape = (jax.ShapeDtypeStruct((BS, HIDDEN), jnp.float32),
                 jax.ShapeDtypeStruct((BS, HIDDEN), jnp.float32),
                 jax.ShapeDtypeStruct((NUM_LAYERS, NUM_HEADS, BS, BS), jnp.float32))

    hid, pooled_all, attn_full = pl.pallas_call(
        fused_bert_kernel,
        out_shape=out_shape,
        grid=(1,),
        in_specs=[_full_spec(x.shape) for x in inputs],
        out_specs=tuple(_full_spec(s.shape) for s in out_shape),
        compiler_params=pltpu.CompilerParams(dimension_semantics=("arbitrary",)),
    )(*inputs)

    hidden = hid.reshape(B, S, HIDDEN)
    pooled = pooled_all.reshape(B, S, HIDDEN)[:, 0, :]                    # CLS rows
    # extract the per-batch diagonal (S, S) blocks of the folded attention (wrapper-side glue)
    blocks = jnp.stack([attn_full[:, :, b * S:(b + 1) * S, b * S:(b + 1) * S]
                        for b in range(B)], axis=1)                       # (L, B, NH, S, S)
    attentions = tuple(blocks[l] for l in range(NUM_LAYERS))
    # mirrors HF BertModel(output_attentions=True) tuple output
    return hidden, pooled, attentions


# ----------------------------- plain-JAX reference (f32, for verification) -----------------------------
def bert_forward_ref(params, input_ids, token_type_ids, attention_mask):
    B, S = input_ids.shape
    emb = (params["word_emb"][input_ids]
           + params["pos_emb"][jnp.arange(S)][None, :, :]
           + params["tok_emb"][token_type_ids]).astype(jnp.float32)

    def ln(x, g, b):
        mu = jnp.mean(x, axis=-1, keepdims=True)
        var = jnp.mean((x - mu) ** 2, axis=-1, keepdims=True)
        return (x - mu) * lax.rsqrt(var + LN_EPS) * g + b

    h = ln(emb, params["emb_ln_g"], params["emb_ln_b"])
    add_mask = ((1.0 - attention_mask.astype(jnp.float32)) * -10000.0)[:, None, None, :]
    attns = []
    for lw in params["layers"]:
        q = h @ lw["wq"] + lw["bq"]
        k = h @ lw["wk"] + lw["bk"]
        v = h @ lw["wv"] + lw["bv"]
        qh = q.reshape(B, S, NUM_HEADS, HEAD_DIM).transpose(0, 2, 1, 3)
        kh = k.reshape(B, S, NUM_HEADS, HEAD_DIM).transpose(0, 2, 1, 3)
        vh = v.reshape(B, S, NUM_HEADS, HEAD_DIM).transpose(0, 2, 1, 3)
        scores = jnp.einsum("bhqd,bhkd->bhqk", qh, kh) / np.sqrt(float(HEAD_DIM)) + add_mask
        probs = jax.nn.softmax(scores, axis=-1)
        attns.append(probs)
        ctx = jnp.einsum("bhqk,bhkd->bhqd", probs, vh).transpose(0, 2, 1, 3).reshape(B, S, HIDDEN)
        attn_out = ctx @ lw["wo"] + lw["bo"]
        h1 = ln(attn_out + h, lw["ln1g"], lw["ln1b"])
        inter = jax.nn.gelu(h1 @ lw["w1"] + lw["b1"], approximate=True)
        h = ln(inter @ lw["w2"] + lw["b2"] + h1, lw["ln2g"], lw["ln2b"])
    pooled = jnp.tanh(h[:, 0, :] @ params["pool_w"] + params["pool_b"])
    return h, pooled, tuple(attns)


# ----------------------------- deterministic synthetic params -----------------------------
def init_params(seed=0):
    key = jax.random.PRNGKey(seed)
    ctr = [0]

    def normal(shape, std=0.02):
        ctr[0] += 1
        return std * jax.random.normal(jax.random.fold_in(key, ctr[0]), shape, dtype=jnp.float32)

    params = {
        "word_emb": normal((VOCAB, HIDDEN)),
        "pos_emb": normal((MAX_POS, HIDDEN)),
        "tok_emb": normal((2, HIDDEN)),
        "emb_ln_g": 1.0 + normal((1, HIDDEN)),
        "emb_ln_b": normal((1, HIDDEN)),
        "pool_w": normal((HIDDEN, HIDDEN)),
        "pool_b": normal((1, HIDDEN)),
        "layers": [],
    }
    for _ in range(NUM_LAYERS):
        params["layers"].append(dict(
            wq=normal((HIDDEN, HIDDEN)), bq=normal((1, HIDDEN)),
            wk=normal((HIDDEN, HIDDEN)), bk=normal((1, HIDDEN)),
            wv=normal((HIDDEN, HIDDEN)), bv=normal((1, HIDDEN)),
            wo=normal((HIDDEN, HIDDEN)), bo=normal((1, HIDDEN)),
            ln1g=1.0 + normal((1, HIDDEN)), ln1b=normal((1, HIDDEN)),
            w1=normal((HIDDEN, INTER)), b1=normal((1, INTER)),
            w2=normal((INTER, HIDDEN)), b2=normal((1, HIDDEN)),
            ln2g=1.0 + normal((1, HIDDEN)), ln2b=normal((1, HIDDEN)),
        ))
    return params


# ----------------------------- host-side k-mer "tokenizer" (glue, no Pallas equivalent) -----------------------------
def tokenize(seqs, kmer=KMER):
    # TODO(synk): real module uses HuggingFace BertTokenizer on k-mer strings; deterministic base-4 mapping used here.
    base = {"A": 0, "C": 1, "G": 2, "T": 3}
    ids = []
    for s in seqs:
        toks = [2]  # [CLS]
        for x in range(len(s) + 1 - kmer):
            km = s[x:x + kmer]
            tid = 5 + sum(base[c] * (4 ** (kmer - 1 - i)) for i, c in enumerate(km))
            toks.append(tid)
        toks.append(3)  # [SEP]
        ids.append(toks)
    input_ids = jnp.asarray(np.array(ids, dtype=np.int32))
    token_type_ids = jnp.zeros_like(input_ids)
    attention_mask = jnp.ones_like(input_ids)
    return input_ids, token_type_ids, attention_mask


# ----------------------------- main -----------------------------
if __name__ == "__main__":
    # deterministic synthetic DNA sequences
    key = jax.random.PRNGKey(0)
    letters = np.array(list("ACGT"))
    codes = np.asarray(jax.random.randint(key, (BATCH, SEQ_CHARS), 0, 4))
    seqs = ["".join(letters[row]) for row in codes]

    input_ids, token_type_ids, attention_mask = tokenize(seqs)
    params = init_params(0)

    fwd = jax.jit(bert_forward)
    seq_out, pooled, attentions = fwd(params, input_ids, token_type_ids, attention_mask)
    jax.block_until_ready((seq_out, pooled, attentions))

    # verify against a plain-JAX f32 reference (kernel runs MXU dots in bf16 -> loosened tolerance)
    seq_ref, pooled_ref, attn_ref = bert_forward_ref(params, input_ids, token_type_ids, attention_mask)
    assert seq_out.shape == (BATCH, SEQ, HIDDEN)
    assert pooled.shape == (BATCH, HIDDEN)
    assert len(attentions) == NUM_LAYERS and attentions[0].shape == (BATCH, NUM_HEADS, SEQ, SEQ)
    np.testing.assert_allclose(np.asarray(seq_out), np.asarray(seq_ref), rtol=2e-2, atol=2e-2)
    np.testing.assert_allclose(np.asarray(pooled), np.asarray(pooled_ref), rtol=2e-2, atol=2e-2)
    for a, ar in zip(attentions, attn_ref):
        np.testing.assert_allclose(np.asarray(a), np.asarray(ar), rtol=2e-2, atol=2e-2)

    print("KERNEL_OK")
</pallas_src>

<mosaic_0001>
module attributes {stable_mosaic.version = 11 : i64} {
  func.func @fused_bert_kernel(%arg0: i32, %arg1: memref<32x64xf32, #tpu.memory_space<vmem>>, %arg2: memref<32x32xf32, #tpu.memory_space<vmem>>, %arg3: memref<1x64xf32, #tpu.memory_space<vmem>>, %arg4: memref<1x64xf32, #tpu.memory_space<vmem>>, %arg5: memref<2x64x192xbf16, #tpu.memory_space<vmem>>, %arg6: memref<2x1x192xf32, #tpu.memory_space<vmem>>, %arg7: memref<2x64x64xbf16, #tpu.memory_space<vmem>>, %arg8: memref<2x1x64xf32, #tpu.memory_space<vmem>>, %arg9: memref<2x1x64xf32, #tpu.memory_space<vmem>>, %arg10: memref<2x1x64xf32, #tpu.memory_space<vmem>>, %arg11: memref<2x64x128xbf16, #tpu.memory_space<vmem>>, %arg12: memref<2x1x128xf32, #tpu.memory_space<vmem>>, %arg13: memref<2x128x64xbf16, #tpu.memory_space<vmem>>, %arg14: memref<2x1x64xf32, #tpu.memory_space<vmem>>, %arg15: memref<2x1x64xf32, #tpu.memory_space<vmem>>, %arg16: memref<2x1x64xf32, #tpu.memory_space<vmem>>, %arg17: memref<64x64xbf16, #tpu.memory_space<vmem>>, %arg18: memref<1x64xf32, #tpu.memory_space<vmem>>, %arg19: memref<32x64xf32, #tpu.memory_space<vmem>>, %arg20: memref<32x64xf32, #tpu.memory_space<vmem>>, %arg21: memref<2x2x32x32xf32, #tpu.memory_space<vmem>>) attributes {dimension_semantics = [#tpu.dimension_semantics<arbitrary>], iteration_bounds = array<i64: 1>, scalar_prefetch = 0 : i64, scratch_operands = 0 : i64, tpu.core_type = #tpu.core_type<tc>, window_params = [{pipeline_mode = #tpu.pipeline_mode<synchronous>, transform_indices = @transform_0, window_bounds = array<i64: 32, 64>}, {pipeline_mode = #tpu.pipeline_mode<synchronous>, transform_indices = @transform_1, window_bounds = array<i64: 32, 32>}, {pipeline_mode = #tpu.pipeline_mode<synchronous>, transform_indices = @transform_2, window_bounds = array<i64: 1, 64>}, {pipeline_mode = #tpu.pipeline_mode<synchronous>, transform_indices = @transform_3, window_bounds = array<i64: 1, 64>}, {pipeline_mode = #tpu.pipeline_mode<synchronous>, transform_indices = @transform_4, window_bounds = array<i64: 2, 64, 192>}, {pipeline_mode = #tpu.pipeline_mode<synchronous>, transform_indices = @transform_5, window_bounds = array<i64: 2, 1, 192>}, {pipeline_mode = #tpu.pipeline_mode<synchronous>, transform_indices = @transform_6, window_bounds = array<i64: 2, 64, 64>}, {pipeline_mode = #tpu.pipeline_mode<synchronous>, transform_indices = @transform_7, window_bounds = array<i64: 2, 1, 64>}, {pipeline_mode = #tpu.pipeline_mode<synchronous>, transform_indices = @transform_8, window_bounds = array<i64: 2, 1, 64>}, {pipeline_mode = #tpu.pipeline_mode<synchronous>, transform_indices = @transform_9, window_bounds = array<i64: 2, 1, 64>}, {pipeline_mode = #tpu.pipeline_mode<synchronous>, transform_indices = @transform_10, window_bounds = array<i64: 2, 64, 128>}, {pipeline_mode = #tpu.pipeline_mode<synchronous>, transform_indices = @transform_11, window_bounds = array<i64: 2, 1, 128>}, {pipeline_mode = #tpu.pipeline_mode<synchronous>, transform_indices = @transform_12, window_bounds = array<i64: 2, 128, 64>}, {pipeline_mode = #tpu.pipeline_mode<synchronous>, transform_indices = @transform_13, window_bounds = array<i64: 2, 1, 64>}, {pipeline_mode = #tpu.pipeline_mode<synchronous>, transform_indices = @transform_14, window_bounds = array<i64: 2, 1, 64>}, {pipeline_mode = #tpu.pipeline_mode<synchronous>, transform_indices = @transform_15, window_bounds = array<i64: 2, 1, 64>}, {pipeline_mode = #tpu.pipeline_mode<synchronous>, transform_indices = @transform_16, window_bounds = array<i64: 64, 64>}, {pipeline_mode = #tpu.pipeline_mode<synchronous>, transform_indices = @transform_17, window_bounds = array<i64: 1, 64>}, {pipeline_mode = #tpu.pipeline_mode<synchronous>, transform_indices = @transform_18, window_bounds = array<i64: 32, 64>}, {pipeline_mode = #tpu.pipeline_mode<synchronous>, transform_indices = @transform_19, window_bounds = array<i64: 32, 64>}, {pipeline_mode = #tpu.pipeline_mode<synchronous>, transform_indices = @transform_20, window_bounds = array<i64: 2, 2, 32, 32>}]} {
    %c0 = arith.constant 0 : index
    %c0_0 = arith.constant 0 : index
    %0 = vector.load %arg2[%c0, %c0_0] : memref<32x32xf32, #tpu.memory_space<vmem>>, vector<32x32xf32>
    %c0_1 = arith.constant 0 : index
    %c0_2 = arith.constant 0 : index
    %1 = vector.load %arg1[%c0_1, %c0_2] : memref<32x64xf32, #tpu.memory_space<vmem>>, vector<32x64xf32>
    %c0_3 = arith.constant 0 : index
    %c0_4 = arith.constant 0 : index
    %2 = vector.load %arg3[%c0_3, %c0_4] : memref<1x64xf32, #tpu.memory_space<vmem>>, vector<1x64xf32>
    %c0_5 = arith.constant 0 : index
    %c0_6 = arith.constant 0 : index
    %3 = vector.load %arg4[%c0_5, %c0_6] : memref<1x64xf32, #tpu.memory_space<vmem>>, vector<1x64xf32>
    %cst = arith.constant dense<0.000000e+00> : vector<32xf32>
    %4 = vector.multi_reduction <add>, %1, %cst [1] : vector<32x64xf32> to vector<32xf32>
    %5 = vector.shape_cast %4 : vector<32xf32> to vector<32x1xf32>
    %cst_7 = arith.constant 6.400000e+01 : f32
    %6 = vector.broadcast %cst_7 : f32 to vector<32x1xf32>
    %7 = arith.divf %5, %6 : vector<32x1xf32>
    %8 = vector.broadcast %7 : vector<32x1xf32> to vector<32x64xf32>
    %9 = arith.subf %1, %8 : vector<32x64xf32>
    %10 = arith.mulf %9, %9 : vector<32x64xf32>
    %cst_8 = arith.constant dense<0.000000e+00> : vector<32xf32>
    %11 = vector.multi_reduction <add>, %10, %cst_8 [1] : vector<32x64xf32> to vector<32xf32>
    %12 = vector.shape_cast %11 : vector<32xf32> to vector<32x1xf32>
    %cst_9 = arith.constant 6.400000e+01 : f32
    %13 = vector.broadcast %cst_9 : f32 to vector<32x1xf32>
    %14 = arith.divf %12, %13 : vector<32x1xf32>
    %15 = vector.broadcast %7 : vector<32x1xf32> to vector<32x64xf32>
    %16 = arith.subf %1, %15 : vector<32x64xf32>
    %cst_10 = arith.constant 9.99999996E-13 : f32
    %17 = vector.broadcast %cst_10 : f32 to vector<32x1xf32>
    %18 = arith.addf %14, %17 : vector<32x1xf32>
    %19 = math.rsqrt %18 : vector<32x1xf32>
    %20 = vector.broadcast %19 : vector<32x1xf32> to vector<32x64xf32>
    %21 = arith.mulf %16, %20 : vector<32x64xf32>
    %22 = vector.broadcast %2 : vector<1x64xf32> to vector<32x64xf32>
    %23 = arith.mulf %21, %22 : vector<32x64xf32>
    %24 = vector.broadcast %3 : vector<1x64xf32> to vector<32x64xf32>
    %25 = arith.addf %23, %24 : vector<32x64xf32>
    %26 = arith.truncf %25 : vector<32x64xf32> to vector<32x64xbf16>
    %c0_11 = arith.constant 0 : index
    %c0_12 = arith.constant 0 : index
    %c0_13 = arith.constant 0 : index
    %27 = vector.load %arg5[%c0_11, %c0_12, %c0_13] : memref<2x64x192xbf16, #tpu.memory_space<vmem>>, vector<1x64x192xbf16>
    %28 = vector.shape_cast %27 : vector<1x64x192xbf16> to vector<64x192xbf16>
    %cst_14 = arith.constant dense<0.000000e+00> : vector<32x192xf32>
    %29 = tpu.matmul %26, %28, %cst_14 {dimension_numbers = #tpu.dot_dimension_numbers<[1], [0], [0], [1], [0, 0, 1, 1], [], []>} : vector<32x64xbf16>, vector<64x192xbf16>, vector<32x192xf32> -> vector<32x192xf32>
    %c0_15 = arith.constant 0 : index
    %c0_16 = arith.constant 0 : index
    %c0_17 = arith.constant 0 : index
    %30 = vector.load %arg6[%c0_15, %c0_16, %c0_17] : memref<2x1x192xf32, #tpu.memory_space<vmem>>, vector<1x1x192xf32>
    %31 = vector.shape_cast %30 : vector<1x1x192xf32> to vector<1x192xf32>
    %32 = vector.broadcast %31 : vector<1x192xf32> to vector<32x192xf32>
    %33 = arith.addf %29, %32 : vector<32x192xf32>
    %34 = arith.truncf %33 : vector<32x192xf32> to vector<32x192xbf16>
    %35 = vector.extract_strided_slice %34 {offsets = [0, 0], sizes = [32, 64], strides = [1, 1]} : vector<32x192xbf16> to vector<32x64xbf16>
    %36 = vector.extract_strided_slice %34 {offsets = [0, 64], sizes = [32, 64], strides = [1, 1]} : vector<32x192xbf16> to vector<32x64xbf16>
    %37 = vector.extract_strided_slice %34 {offsets = [0, 128], sizes = [32, 64], strides = [1, 1]} : vector<32x192xbf16> to vector<32x64xbf16>
    %c0_18 = arith.constant 0 : index
    %c0_19 = arith.constant 0 : index
    %c0_20 = arith.constant 0 : index
    %38 = vector.load %arg7[%c0_18, %c0_19, %c0_20] : memref<2x64x64xbf16, #tpu.memory_space<vmem>>, vector<1x64x64xbf16>
    %39 = vector.shape_cast %38 : vector<1x64x64xbf16> to vector<64x64xbf16>
    %40 = vector.extract_strided_slice %35 {offsets = [0, 0], sizes = [32, 32], strides = [1, 1]} : vector<32x64xbf16> to vector<32x32xbf16>
    %41 = vector.extract_strided_slice %36 {offsets = [0, 0], sizes = [32, 32], strides = [1, 1]} : vector<32x64xbf16> to vector<32x32xbf16>
    %42 = vector.extract_strided_slice %37 {offsets = [0, 0], sizes = [32, 32], strides = [1, 1]} : vector<32x64xbf16> to vector<32x32xbf16>
    %cst_21 = arith.constant dense<0.000000e+00> : vector<32x32xf32>
    %43 = tpu.matmul %40, %41, %cst_21 {dimension_numbers = #tpu.dot_dimension_numbers<[1], [1], [0], [0], [0, 0, 1, 0], [], []>} : vector<32x32xbf16>, vector<32x32xbf16>, vector<32x32xf32> -> vector<32x32xf32>
    %44 = arith.addf %43, %0 : vector<32x32xf32>
    %cst_22 = arith.constant dense<0xFF800000> : vector<32xf32>
    %45 = vector.multi_reduction <maximumf>, %44, %cst_22 [1] : vector<32x32xf32> to vector<32xf32>
    %46 = vector.shape_cast %45 : vector<32xf32> to vector<32x1xf32>
    %47 = vector.broadcast %46 : vector<32x1xf32> to vector<32x32xf32>
    %48 = arith.subf %44, %47 : vector<32x32xf32>
    %49 = math.exp %48 : vector<32x32xf32>
    %cst_23 = arith.constant dense<0.000000e+00> : vector<32xf32>
    %50 = vector.multi_reduction <add>, %49, %cst_23 [1] : vector<32x32xf32> to vector<32xf32>
    %51 = vector.shape_cast %50 : vector<32xf32> to vector<32x1xf32>
    %52 = tpu.reciprocal %51 {approx = true} : vector<32x1xf32> -> vector<32x1xf32>
    %53 = vector.broadcast %52 : vector<32x1xf32> to vector<32x32xf32>
    %54 = arith.mulf %49, %53 : vector<32x32xf32>
    %c0_24 = arith.constant 0 : index
    %c0_25 = arith.constant 0 : index
    %c0_26 = arith.constant 0 : index
    %c0_27 = arith.constant 0 : index
    %55 = vector.load %arg21[%c0_24, %c0_25, %c0_26, %c0_27] : memref<2x2x32x32xf32, #tpu.memory_space<vmem>>, vector<1x1x32x32xf32>
    %56 = vector.shape_cast %55 : vector<1x1x32x32xf32> to vector<32x32xf32>
    %57 = vector.shape_cast %54 : vector<32x32xf32> to vector<1x1x32x32xf32>
    tpu.vector_store %arg21[%c0_24, %c0_25, %c0_26, %c0_27], %57 {strides = array<i32>} : memref<2x2x32x32xf32, #tpu.memory_space<vmem>>, vector<1x1x32x32xf32>,
    %58 = arith.truncf %54 : vector<32x32xf32> to vector<32x32xbf16>
    %cst_28 = arith.constant dense<0.000000e+00> : vector<32x32xf32>
    %59 = tpu.matmul %58, %42, %cst_28 {dimension_numbers = #tpu.dot_dimension_numbers<[1], [0], [0], [1], [0, 0, 1, 1], [], []>} : vector<32x32xbf16>, vector<32x32xbf16>, vector<32x32xf32> -> vector<32x32xf32>
    %60 = arith.truncf %59 : vector<32x32xf32> to vector<32x32xbf16>
    %61 = vector.extract_strided_slice %39 {offsets = [0, 0], sizes = [32, 64], strides = [1, 1]} : vector<64x64xbf16> to vector<32x64xbf16>
    %cst_29 = arith.constant dense<0.000000e+00> : vector<32x64xf32>
    %62 = tpu.matmul %60, %61, %cst_29 {dimension_numbers = #tpu.dot_dimension_numbers<[1], [0], [0], [1], [0, 0, 1, 1], [], []>} : vector<32x32xbf16>, vector<32x64xbf16>, vector<32x64xf32> -> vector<32x64xf32>
    %63 = vector.extract_strided_slice %35 {offsets = [0, 32], sizes = [32, 32], strides = [1, 1]} : vector<32x64xbf16> to vector<32x32xbf16>
    %64 = vector.extract_strided_slice %36 {offsets = [0, 32], sizes = [32, 32], strides = [1, 1]} : vector<32x64xbf16> to vector<32x32xbf16>
    %65 = vector.extract_strided_slice %37 {offsets = [0, 32], sizes = [32, 32], strides = [1, 1]} : vector<32x64xbf16> to vector<32x32xbf16>
    %cst_30 = arith.constant dense<0.000000e+00> : vector<32x32xf32>
    %66 = tpu.matmul %63, %64, %cst_30 {dimension_numbers = #tpu.dot_dimension_numbers<[1], [1], [0], [0], [0, 0, 1, 0], [], []>} : vector<32x32xbf16>, vector<32x32xbf16>, vector<32x32xf32> -> vector<32x32xf32>
    %67 = arith.addf %66, %0 : vector<32x32xf32>
    %cst_31 = arith.constant dense<0xFF800000> : vector<32xf32>
    %68 = vector.multi_reduction <maximumf>, %67, %cst_31 [1] : vector<32x32xf32> to vector<32xf32>
    %69 = vector.shape_cast %68 : vector<32xf32> to vector<32x1xf32>
    %70 = vector.broadcast %69 : vector<32x1xf32> to vector<32x32xf32>
    %71 = arith.subf %67, %70 : vector<32x32xf32>
    %72 = math.exp %71 : vector<32x32xf32>
    %cst_32 = arith.constant dense<0.000000e+00> : vector<32xf32>
    %73 = vector.multi_reduction <add>, %72, %cst_32 [1] : vector<32x32xf32> to vector<32xf32>
    %74 = vector.shape_cast %73 : vector<32xf32> to vector<32x1xf32>
    %75 = tpu.reciprocal %74 {approx = true} : vector<32x1xf32> -> vector<32x1xf32>
    %76 = vector.broadcast %75 : vector<32x1xf32> to vector<32x32xf32>
    %77 = arith.mulf %72, %76 : vector<32x32xf32>
    %c0_33 = arith.constant 0 : index
    %c1 = arith.constant 1 : index
    %c0_34 = arith.constant 0 : index
    %c0_35 = arith.constant 0 : index
    %78 = vector.load %arg21[%c0_33, %c1, %c0_34, %c0_35] : memref<2x2x32x32xf32, #tpu.memory_space<vmem>>, vector<1x1x32x32xf32>
    %79 = vector.shape_cast %78 : vector<1x1x32x32xf32> to vector<32x32xf32>
    %80 = vector.shape_cast %77 : vector<32x32xf32> to vector<1x1x32x32xf32>
    tpu.vector_store %arg21[%c0_33, %c1, %c0_34, %c0_35], %80 {strides = array<i32>} : memref<2x2x32x32xf32, #tpu.memory_space<vmem>>, vector<1x1x32x32xf32>,
    %81 = arith.truncf %77 : vector<32x32xf32> to vector<32x32xbf16>
    %cst_36 = arith.constant dense<0.000000e+00> : vector<32x32xf32>
    %82 = tpu.matmul %81, %65, %cst_36 {dimension_numbers = #tpu.dot_dimension_numbers<[1], [0], [0], [1], [0, 0, 1, 1], [], []>} : vector<32x32xbf16>, vector<32x32xbf16>, vector<32x32xf32> -> vector<32x32xf32>
    %83 = arith.truncf %82 : vector<32x32xf32> to vector<32x32xbf16>
    %84 = vector.extract_strided_slice %39 {offsets = [32, 0], sizes = [32, 64], strides = [1, 1]} : vector<64x64xbf16> to vector<32x64xbf16>
    %cst_37 = arith.constant dense<0.000000e+00> : vector<32x64xf32>
    %85 = tpu.matmul %83, %84, %cst_37 {dimension_numbers = #tpu.dot_dimension_numbers<[1], [0], [0], [1], [0, 0, 1, 1], [], []>} : vector<32x32xbf16>, vector<32x64xbf16>, vector<32x64xf32> -> vector<32x64xf32>
    %86 = arith.addf %62, %85 : vector<32x64xf32>
    %c0_38 = arith.constant 0 : index
    %c0_39 = arith.constant 0 : index
    %c0_40 = arith.constant 0 : index
    %87 = vector.load %arg8[%c0_38, %c0_39, %c0_40] : memref<2x1x64xf32, #tpu.memory_space<vmem>>, vector<1x1x64xf32>
    %88 = vector.shape_cast %87 : vector<1x1x64xf32> to vector<1x64xf32>
    %89 = vector.broadcast %88 : vector<1x64xf32> to vector<32x64xf32>
    %90 = arith.addf %86, %89 : vector<32x64xf32>
    %91 = arith.addf %90, %25 : vector<32x64xf32>
    %c0_41 = arith.constant 0 : index
    %c0_42 = arith.constant 0 : index
    %c0_43 = arith.constant 0 : index
    %92 = vector.load %arg9[%c0_41, %c0_42, %c0_43] : memref<2x1x64xf32, #tpu.memory_space<vmem>>, vector<1x1x64xf32>
    %93 = vector.shape_cast %92 : vector<1x1x64xf32> to vector<1x64xf32>
    %c0_44 = arith.constant 0 : index
    %c0_45 = arith.constant 0 : index
    %c0_46 = arith.constant 0 : index
    %94 = vector.load %arg10[%c0_44, %c0_45, %c0_46] : memref<2x1x64xf32, #tpu.memory_space<vmem>>, vector<1x1x64xf32>
    %95 = vector.shape_cast %94 : vector<1x1x64xf32> to vector<1x64xf32>
    %cst_47 = arith.constant dense<0.000000e+00> : vector<32xf32>
    %96 = vector.multi_reduction <add>, %91, %cst_47 [1] : vector<32x64xf32> to vector<32xf32>
    %97 = vector.shape_cast %96 : vector<32xf32> to vector<32x1xf32>
    %cst_48 = arith.constant 6.400000e+01 : f32
    %98 = vector.broadcast %cst_48 : f32 to vector<32x1xf32>
    %99 = arith.divf %97, %98 : vector<32x1xf32>
    %100 = vector.broadcast %99 : vector<32x1xf32> to vector<32x64xf32>
    %101 = arith.subf %91, %100 : vector<32x64xf32>
    %102 = arith.mulf %101, %101 : vector<32x64xf32>
    %cst_49 = arith.constant dense<0.000000e+00> : vector<32xf32>
    %103 = vector.multi_reduction <add>, %102, %cst_49 [1] : vector<32x64xf32> to vector<32xf32>
    %104 = vector.shape_cast %103 : vector<32xf32> to vector<32x1xf32>
    %cst_50 = arith.constant 6.400000e+01 : f32
    %105 = vector.broadcast %cst_50 : f32 to vector<32x1xf32>
    %106 = arith.divf %104, %105 : vector<32x1xf32>
    %107 = vector.broadcast %99 : vector<32x1xf32> to vector<32x64xf32>
    %108 = arith.subf %91, %107 : vector<32x64xf32>
    %cst_51 = arith.constant 9.99999996E-13 : f32
    %109 = vector.broadcast %cst_51 : f32 to vector<32x1xf32>
    %110 = arith.addf %106, %109 : vector<32x1xf32>
    %111 = math.rsqrt %110 : vector<32x1xf32>
    %112 = vector.broadcast %111 : vector<32x1xf32> to vector<32x64xf32>
    %113 = arith.mulf %108, %112 : vector<32x64xf32>
    %114 = vector.broadcast %93 : vector<1x64xf32> to vector<32x64xf32>
    %115 = arith.mulf %113, %114 : vector<32x64xf32>
    %116 = vector.broadcast %95 : vector<1x64xf32> to vector<32x64xf32>
    %117 = arith.addf %115, %116 : vector<32x64xf32>
    %118 = arith.truncf %117 : vector<32x64xf32> to vector<32x64xbf16>
    %c0_52 = arith.constant 0 : index
    %c0_53 = arith.constant 0 : index
    %c0_54 = arith.constant 0 : index
    %119 = vector.load %arg11[%c0_52, %c0_53, %c0_54] : memref<2x64x128xbf16, #tpu.memory_space<vmem>>, vector<1x64x128xbf16>
    %120 = vector.shape_cast %119 : vector<1x64x128xbf16> to vector<64x128xbf16>
    %cst_55 = arith.constant dense<0.000000e+00> : vector<32x128xf32>
    %121 = tpu.matmul %118, %120, %cst_55 {dimension_numbers = #tpu.dot_dimension_numbers<[1], [0], [0], [1], [0, 0, 1, 1], [], []>} : vector<32x64xbf16>, vector<64x128xbf16>, vector<32x128xf32> -> vector<32x128xf32>
    %c0_56 = arith.constant 0 : index
    %c0_57 = arith.constant 0 : index
    %c0_58 = arith.constant 0 : index
    %122 = vector.load %arg12[%c0_56, %c0_57, %c0_58] : memref<2x1x128xf32, #tpu.memory_space<vmem>>, vector<1x1x128xf32>
    %123 = vector.shape_cast %122 : vector<1x1x128xf32> to vector<1x128xf32>
    %124 = vector.broadcast %123 : vector<1x128xf32> to vector<32x128xf32>
    %125 = arith.addf %121, %124 : vector<32x128xf32>
    %126 = arith.mulf %125, %125 : vector<32x128xf32>
    %127 = arith.mulf %125, %126 : vector<32x128xf32>
    %cst_59 = arith.constant 4.471500e-02 : f32
    %128 = vector.broadcast %cst_59 : f32 to vector<32x128xf32>
    %129 = arith.mulf %128, %127 : vector<32x128xf32>
    %130 = arith.addf %125, %129 : vector<32x128xf32>
    %cst_60 = arith.constant 0.797884583 : f32
    %131 = vector.broadcast %cst_60 : f32 to vector<32x128xf32>
    %132 = arith.mulf %131, %130 : vector<32x128xf32>
    %133 = math.tanh %132 : vector<32x128xf32>
    %cst_61 = arith.constant 1.000000e+00 : f32
    %134 = vector.broadcast %cst_61 : f32 to vector<32x128xf32>
    %135 = arith.addf %134, %133 : vector<32x128xf32>
    %cst_62 = arith.constant 5.000000e-01 : f32
    %136 = vector.broadcast %cst_62 : f32 to vector<32x128xf32>
    %137 = arith.mulf %136, %135 : vector<32x128xf32>
    %138 = arith.mulf %125, %137 : vector<32x128xf32>
    %139 = arith.truncf %138 : vector<32x128xf32> to vector<32x128xbf16>
    %c0_63 = arith.constant 0 : index
    %c0_64 = arith.constant 0 : index
    %c0_65 = arith.constant 0 : index
    %140 = vector.load %arg13[%c0_63, %c0_64, %c0_65] : memref<2x128x64xbf16, #tpu.memory_space<vmem>>, vector<1x128x64xbf16>
    %141 = vector.shape_cast %140 : vector<1x128x64xbf16> to vector<128x64xbf16>
    %cst_66 = arith.constant dense<0.000000e+00> : vector<32x64xf32>
    %142 = tpu.matmul %139, %141, %cst_66 {dimension_numbers = #tpu.dot_dimension_numbers<[1], [0], [0], [1], [0, 0, 1, 1], [], []>} : vector<32x128xbf16>, vector<128x64xbf16>, vector<32x64xf32> -> vector<32x64xf32>
    %c0_67 = arith.constant 0 : index
    %c0_68 = arith.constant 0 : index
    %c0_69 = arith.constant 0 : index
    %143 = vector.load %arg14[%c0_67, %c0_68, %c0_69] : memref<2x1x64xf32, #tpu.memory_space<vmem>>, vector<1x1x64xf32>
    %144 = vector.shape_cast %143 : vector<1x1x64xf32> to vector<1x64xf32>
    %145 = vector.broadcast %144 : vector<1x64xf32> to vector<32x64xf32>
    %146 = arith.addf %142, %145 : vector<32x64xf32>
    %147 = arith.addf %146, %117 : vector<32x64xf32>
    %c0_70 = arith.constant 0 : index
    %c0_71 = arith.constant 0 : index
    %c0_72 = arith.constant 0 : index
    %148 = vector.load %arg15[%c0_70, %c0_71, %c0_72] : memref<2x1x64xf32, #tpu.memory_space<vmem>>, vector<1x1x64xf32>
    %149 = vector.shape_cast %148 : vector<1x1x64xf32> to vector<1x64xf32>
    %c0_73 = arith.constant 0 : index
    %c0_74 = arith.constant 0 : index
    %c0_75 = arith.constant 0 : index
    %150 = vector.load %arg16[%c0_73, %c0_74, %c0_75] : memref<2x1x64xf32, #tpu.memory_space<vmem>>, vector<1x1x64xf32>
    %151 = vector.shape_cast %150 : vector<1x1x64xf32> to vector<1x64xf32>
    %cst_76 = arith.constant dense<0.000000e+00> : vector<32xf32>
    %152 = vector.multi_reduction <add>, %147, %cst_76 [1] : vector<32x64xf32> to vector<32xf32>
    %153 = vector.shape_cast %152 : vector<32xf32> to vector<32x1xf32>
    %cst_77 = arith.constant 6.400000e+01 : f32
    %154 = vector.broadcast %cst_77 : f32 to vector<32x1xf32>
    %155 = arith.divf %153, %154 : vector<32x1xf32>
    %156 = vector.broadcast %155 : vector<32x1xf32> to vector<32x64xf32>
    %157 = arith.subf %147, %156 : vector<32x64xf32>
    %158 = arith.mulf %157, %157 : vector<32x64xf32>
    %cst_78 = arith.constant dense<0.000000e+00> : vector<32xf32>
    %159 = vector.multi_reduction <add>, %158, %cst_78 [1] : vector<32x64xf32> to vector<32xf32>
    %160 = vector.shape_cast %159 : vector<32xf32> to vector<32x1xf32>
    %cst_79 = arith.constant 6.400000e+01 : f32
    %161 = vector.broadcast %cst_79 : f32 to vector<32x1xf32>
    %162 = arith.divf %160, %161 : vector<32x1xf32>
    %163 = vector.broadcast %155 : vector<32x1xf32> to vector<32x64xf32>
    %164 = arith.subf %147, %163 : vector<32x64xf32>
    %cst_80 = arith.constant 9.99999996E-13 : f32
    %165 = vector.broadcast %cst_80 : f32 to vector<32x1xf32>
    %166 = arith.addf %162, %165 : vector<32x1xf32>
    %167 = math.rsqrt %166 : vector<32x1xf32>
    %168 = vector.broadcast %167 : vector<32x1xf32> to vector<32x64xf32>
    %169 = arith.mulf %164, %168 : vector<32x64xf32>
    %170 = vector.broadcast %149 : vector<1x64xf32> to vector<32x64xf32>
    %171 = arith.mulf %169, %170 : vector<32x64xf32>
    %172 = vector.broadcast %151 : vector<1x64xf32> to vector<32x64xf32>
    %173 = arith.addf %171, %172 : vector<32x64xf32>
    %174 = arith.truncf %173 : vector<32x64xf32> to vector<32x64xbf16>
    %c1_81 = arith.constant 1 : index
    %c0_82 = arith.constant 0 : index
    %c0_83 = arith.constant 0 : index
    %175 = vector.load %arg5[%c1_81, %c0_82, %c0_83] : memref<2x64x192xbf16, #tpu.memory_space<vmem>>, vector<1x64x192xbf16>
    %176 = vector.shape_cast %175 : vector<1x64x192xbf16> to vector<64x192xbf16>
    %cst_84 = arith.constant dense<0.000000e+00> : vector<32x192xf32>
    %177 = tpu.matmul %174, %176, %cst_84 {dimension_numbers = #tpu.dot_dimension_numbers<[1], [0], [0], [1], [0, 0, 1, 1], [], []>} : vector<32x64xbf16>, vector<64x192xbf16>, vector<32x192xf32> -> vector<32x192xf32>
    %c1_85 = arith.constant 1 : index
    %c0_86 = arith.constant 0 : index
    %c0_87 = arith.constant 0 : index
    %178 = vector.load %arg6[%c1_85, %c0_86, %c0_87] : memref<2x1x192xf32, #tpu.memory_space<vmem>>, vector<1x1x192xf32>
    %179 = vector.shape_cast %178 : vector<1x1x192xf32> to vector<1x192xf32>
    %180 = vector.broadcast %179 : vector<1x192xf32> to vector<32x192xf32>
    %181 = arith.addf %177, %180 : vector<32x192xf32>
    %182 = arith.truncf %181 : vector<32x192xf32> to vector<32x192xbf16>
    %183 = vector.extract_strided_slice %182 {offsets = [0, 0], sizes = [32, 64], strides = [1, 1]} : vector<32x192xbf16> to vector<32x64xbf16>
    %184 = vector.extract_strided_slice %182 {offsets = [0, 64], sizes = [32, 64], strides = [1, 1]} : vector<32x192xbf16> to vector<32x64xbf16>
    %185 = vector.extract_strided_slice %182 {offsets = [0, 128], sizes = [32, 64], strides = [1, 1]} : vector<32x192xbf16> to vector<32x64xbf16>
    %c1_88 = arith.constant 1 : index
    %c0_89 = arith.constant 0 : index
    %c0_90 = arith.constant 0 : index
    %186 = vector.load %arg7[%c1_88, %c0_89, %c0_90] : memref<2x64x64xbf16, #tpu.memory_space<vmem>>, vector<1x64x64xbf16>
    %187 = vector.shape_cast %186 : vector<1x64x64xbf16> to vector<64x64xbf16>
    %188 = vector.extract_strided_slice %183 {offsets = [0, 0], sizes = [32, 32], strides = [1, 1]} : vector<32x64xbf16> to vector<32x32xbf16>
    %189 = vector.extract_strided_slice %184 {offsets = [0, 0], sizes = [32, 32], strides = [1, 1]} : vector<32x64xbf16> to vector<32x32xbf16>
    %190 = vector.extract_strided_slice %185 {offsets = [0, 0], sizes = [32, 32], strides = [1, 1]} : vector<32x64xbf16> to vector<32x32xbf16>
    %cst_91 = arith.constant dense<0.000000e+00> : vector<32x32xf32>
    %191 = tpu.matmul %188, %189, %cst_91 {dimension_numbers = #tpu.dot_dimension_numbers<[1], [1], [0], [0], [0, 0, 1, 0], [], []>} : vector<32x32xbf16>, vector<32x32xbf16>, vector<32x32xf32> -> vector<32x32xf32>
    %192 = arith.addf %191, %0 : vector<32x32xf32>
    %cst_92 = arith.constant dense<0xFF800000> : vector<32xf32>
    %193 = vector.multi_reduction <maximumf>, %192, %cst_92 [1] : vector<32x32xf32> to vector<32xf32>
    %194 = vector.shape_cast %193 : vector<32xf32> to vector<32x1xf32>
    %195 = vector.broadcast %194 : vector<32x1xf32> to vector<32x32xf32>
    %196 = arith.subf %192, %195 : vector<32x32xf32>
    %197 = math.exp %196 : vector<32x32xf32>
    %cst_93 = arith.constant dense<0.000000e+00> : vector<32xf32>
    %198 = vector.multi_reduction <add>, %197, %cst_93 [1] : vector<32x32xf32> to vector<32xf32>
    %199 = vector.shape_cast %198 : vector<32xf32> to vector<32x1xf32>
    %200 = tpu.reciprocal %199 {approx = true} : vector<32x1xf32> -> vector<32x1xf32>
    %201 = vector.broadcast %200 : vector<32x1xf32> to vector<32x32xf32>
    %202 = arith.mulf %197, %201 : vector<32x32xf32>
    %c1_94 = arith.constant 1 : index
    %c0_95 = arith.constant 0 : index
    %c0_96 = arith.constant 0 : index
    %c0_97 = arith.constant 0 : index
    %203 = vector.load %arg21[%c1_94, %c0_95, %c0_96, %c0_97] : memref<2x2x32x32xf32, #tpu.memory_space<vmem>>, vector<1x1x32x32xf32>
    %204 = vector.shape_cast %203 : vector<1x1x32x32xf32> to vector<32x32xf32>
    %205 = vector.shape_cast %202 : vector<32x32xf32> to vector<1x1x32x32xf32>
    tpu.vector_store %arg21[%c1_94, %c0_95, %c0_96, %c0_97], %205 {strides = array<i32>} : memref<2x2x32x32xf32, #tpu.memory_space<vmem>>, vector<1x1x32x32xf32>,
    %206 = arith.truncf %202 : vector<32x32xf32> to vector<32x32xbf16>
    %cst_98 = arith.constant dense<0.000000e+00> : vector<32x32xf32>
    %207 = tpu.matmul %206, %190, %cst_98 {dimension_numbers = #tpu.dot_dimension_numbers<[1], [0], [0], [1], [0, 0, 1, 1], [], []>} : vector<32x32xbf16>, vector<32x32xbf16>, vector<32x32xf32> -> vector<32x32xf32>
    %208 = arith.truncf %207 : vector<32x32xf32> to vector<32x32xbf16>
    %209 = vector.extract_strided_slice %187 {offsets = [0, 0], sizes = [32, 64], strides = [1, 1]} : vector<64x64xbf16> to vector<32x64xbf16>
    %cst_99 = arith.constant dense<0.000000e+00> : vector<32x64xf32>
    %210 = tpu.matmul %208, %209, %cst_99 {dimension_numbers = #tpu.dot_dimension_numbers<[1], [0], [0], [1], [0, 0, 1, 1], [], []>} : vector<32x32xbf16>, vector<32x64xbf16>, vector<32x64xf32> -> vector<32x64xf32>
    %211 = vector.extract_strided_slice %183 {offsets = [0, 32], sizes = [32, 32], strides = [1, 1]} : vector<32x64xbf16> to vector<32x32xbf16>
    %212 = vector.extract_strided_slice %184 {offsets = [0, 32], sizes = [32, 32], strides = [1, 1]} : vector<32x64xbf16> to vector<32x32xbf16>
    %213 = vector.extract_strided_slice %185 {offsets = [0, 32], sizes = [32, 32], strides = [1, 1]} : vector<32x64xbf16> to vector<32x32xbf16>
    %cst_100 = arith.constant dense<0.000000e+00> : vector<32x32xf32>
    %214 = tpu.matmul %211, %212, %cst_100 {dimension_numbers = #tpu.dot_dimension_numbers<[1], [1], [0], [0], [0, 0, 1, 0], [], []>} : vector<32x32xbf16>, vector<32x32xbf16>, vector<32x32xf32> -> vector<32x32xf32>
    %215 = arith.addf %214, %0 : vector<32x32xf32>
    %cst_101 = arith.constant dense<0xFF800000> : vector<32xf32>
    %216 = vector.multi_reduction <maximumf>, %215, %cst_101 [1] : vector<32x32xf32> to vector<32xf32>
    %217 = vector.shape_cast %216 : vector<32xf32> to vector<32x1xf32>
    %218 = vector.broadcast %217 : vector<32x1xf32> to vector<32x32xf32>
    %219 = arith.subf %215, %218 : vector<32x32xf32>
    %220 = math.exp %219 : vector<32x32xf32>
    %cst_102 = arith.constant dense<0.000000e+00> : vector<32xf32>
    %221 = vector.multi_reduction <add>, %220, %cst_102 [1] : vector<32x32xf32> to vector<32xf32>
    %222 = vector.shape_cast %221 : vector<32xf32> to vector<32x1xf32>
    %223 = tpu.reciprocal %222 {approx = true} : vector<32x1xf32> -> vector<32x1xf32>
    %224 = vector.broadcast %223 : vector<32x1xf32> to vector<32x32xf32>
    %225 = arith.mulf %220, %224 : vector<32x32xf32>
    %c1_103 = arith.constant 1 : index
    %c1_104 = arith.constant 1 : index
    %c0_105 = arith.constant 0 : index
    %c0_106 = arith.constant 0 : index
    %226 = vector.load %arg21[%c1_103, %c1_104, %c0_105, %c0_106] : memref<2x2x32x32xf32, #tpu.memory_space<vmem>>, vector<1x1x32x32xf32>
    %227 = vector.shape_cast %226 : vector<1x1x32x32xf32> to vector<32x32xf32>
    %228 = vector.shape_cast %225 : vector<32x32xf32> to vector<1x1x32x32xf32>
    tpu.vector_store %arg21[%c1_103, %c1_104, %c0_105, %c0_106], %228 {strides = array<i32>} : memref<2x2x32x32xf32, #tpu.memory_space<vmem>>, vector<1x1x32x32xf32>,
    %229 = arith.truncf %225 : vector<32x32xf32> to vector<32x32xbf16>
    %cst_107 = arith.constant dense<0.000000e+00> : vector<32x32xf32>
    %230 = tpu.matmul %229, %213, %cst_107 {dimension_numbers = #tpu.dot_dimension_numbers<[1], [0], [0], [1], [0, 0, 1, 1], [], []>} : vector<32x32xbf16>, vector<32x32xbf16>, vector<32x32xf32> -> vector<32x32xf32>
    %231 = arith.truncf %230 : vector<32x32xf32> to vector<32x32xbf16>
    %232 = vector.extract_strided_slice %187 {offsets = [32, 0], sizes = [32, 64], strides = [1, 1]} : vector<64x64xbf16> to vector<32x64xbf16>
    %cst_108 = arith.constant dense<0.000000e+00> : vector<32x64xf32>
    %233 = tpu.matmul %231, %232, %cst_108 {dimension_numbers = #tpu.dot_dimension_numbers<[1], [0], [0], [1], [0, 0, 1, 1], [], []>} : vector<32x32xbf16>, vector<32x64xbf16>, vector<32x64xf32> -> vector<32x64xf32>
    %234 = arith.addf %210, %233 : vector<32x64xf32>
    %c1_109 = arith.constant 1 : index
    %c0_110 = arith.constant 0 : index
    %c0_111 = arith.constant 0 : index
    %235 = vector.load %arg8[%c1_109, %c0_110, %c0_111] : memref<2x1x64xf32, #tpu.memory_space<vmem>>, vector<1x1x64xf32>
    %236 = vector.shape_cast %235 : vector<1x1x64xf32> to vector<1x64xf32>
    %237 = vector.broadcast %236 : vector<1x64xf32> to vector<32x64xf32>
    %238 = arith.addf %234, %237 : vector<32x64xf32>
    %239 = arith.addf %238, %173 : vector<32x64xf32>
    %c1_112 = arith.constant 1 : index
    %c0_113 = arith.constant 0 : index
    %c0_114 = arith.constant 0 : index
    %240 = vector.load %arg9[%c1_112, %c0_113, %c0_114] : memref<2x1x64xf32, #tpu.memory_space<vmem>>, vector<1x1x64xf32>
    %241 = vector.shape_cast %240 : vector<1x1x64xf32> to vector<1x64xf32>
    %c1_115 = arith.constant 1 : index
    %c0_116 = arith.constant 0 : index
    %c0_117 = arith.constant 0 : index
    %242 = vector.load %arg10[%c1_115, %c0_116, %c0_117] : memref<2x1x64xf32, #tpu.memory_space<vmem>>, vector<1x1x64xf32>
    %243 = vector.shape_cast %242 : vector<1x1x64xf32> to vector<1x64xf32>
    %cst_118 = arith.constant dense<0.000000e+00> : vector<32xf32>
    %244 = vector.multi_reduction <add>, %239, %cst_118 [1] : vector<32x64xf32> to vector<32xf32>
    %245 = vector.shape_cast %244 : vector<32xf32> to vector<32x1xf32>
    %cst_119 = arith.constant 6.400000e+01 : f32
    %246 = vector.broadcast %cst_119 : f32 to vector<32x1xf32>
    %247 = arith.divf %245, %246 : vector<32x1xf32>
    %248 = vector.broadcast %247 : vector<32x1xf32> to vector<32x64xf32>
    %249 = arith.subf %239, %248 : vector<32x64xf32>
    %250 = arith.mulf %249, %249 : vector<32x64xf32>
    %cst_120 = arith.constant dense<0.000000e+00> : vector<32xf32>
    %251 = vector.multi_reduction <add>, %250, %cst_120 [1] : vector<32x64xf32> to vector<32xf32>
    %252 = vector.shape_cast %251 : vector<32xf32> to vector<32x1xf32>
    %cst_121 = arith.constant 6.400000e+01 : f32
    %253 = vector.broadcast %cst_121 : f32 to vector<32x1xf32>
    %254 = arith.divf %252, %253 : vector<32x1xf32>
    %255 = vector.broadcast %247 : vector<32x1xf32> to vector<32x64xf32>
    %256 = arith.subf %239, %255 : vector<32x64xf32>
    %cst_122 = arith.constant 9.99999996E-13 : f32
    %257 = vector.broadcast %cst_122 : f32 to vector<32x1xf32>
    %258 = arith.addf %254, %257 : vector<32x1xf32>
    %259 = math.rsqrt %258 : vector<32x1xf32>
    %260 = vector.broadcast %259 : vector<32x1xf32> to vector<32x64xf32>
    %261 = arith.mulf %256, %260 : vector<32x64xf32>
    %262 = vector.broadcast %241 : vector<1x64xf32> to vector<32x64xf32>
    %263 = arith.mulf %261, %262 : vector<32x64xf32>
    %264 = vector.broadcast %243 : vector<1x64xf32> to vector<32x64xf32>
    %265 = arith.addf %263, %264 : vector<32x64xf32>
    %266 = arith.truncf %265 : vector<32x64xf32> to vector<32x64xbf16>
    %c1_123 = arith.constant 1 : index
    %c0_124 = arith.constant 0 : index
    %c0_125 = arith.constant 0 : index
    %267 = vector.load %arg11[%c1_123, %c0_124, %c0_125] : memref<2x64x128xbf16, #tpu.memory_space<vmem>>, vector<1x64x128xbf16>
    %268 = vector.shape_cast %267 : vector<1x64x128xbf16> to vector<64x128xbf16>
    %cst_126 = arith.constant dense<0.000000e+00> : vector<32x128xf32>
    %269 = tpu.matmul %266, %268, %cst_126 {dimension_numbers = #tpu.dot_dimension_numbers<[1], [0], [0], [1], [0, 0, 1, 1], [], []>} : vector<32x64xbf16>, vector<64x128xbf16>, vector<32x128xf32> -> vector<32x128xf32>
    %c1_127 = arith.constant 1 : index
    %c0_128 = arith.constant 0 : index
    %c0_129 = arith.constant 0 : index
    %270 = vector.load %arg12[%c1_127, %c0_128, %c0_129] : memref<2x1x128xf32, #tpu.memory_space<vmem>>, vector<1x1x128xf32>
    %271 = vector.shape_cast %270 : vector<1x1x128xf32> to vector<1x128xf32>
    %272 = vector.broadcast %271 : vector<1x128xf32> to vector<32x128xf32>
    %273 = arith.addf %269, %272 : vector<32x128xf32>
    %274 = arith.mulf %273, %273 : vector<32x128xf32>
    %275 = arith.mulf %273, %274 : vector<32x128xf32>
    %cst_130 = arith.constant 4.471500e-02 : f32
    %276 = vector.broadcast %cst_130 : f32 to vector<32x128xf32>
    %277 = arith.mulf %276, %275 : vector<32x128xf32>
    %278 = arith.addf %273, %277 : vector<32x128xf32>
    %cst_131 = arith.constant 0.797884583 : f32
    %279 = vector.broadcast %cst_131 : f32 to vector<32x128xf32>
    %280 = arith.mulf %279, %278 : vector<32x128xf32>
    %281 = math.tanh %280 : vector<32x128xf32>
    %cst_132 = arith.constant 1.000000e+00 : f32
    %282 = vector.broadcast %cst_132 : f32 to vector<32x128xf32>
    %283 = arith.addf %282, %281 : vector<32x128xf32>
    %cst_133 = arith.constant 5.000000e-01 : f32
    %284 = vector.broadcast %cst_133 : f32 to vector<32x128xf32>
    %285 = arith.mulf %284, %283 : vector<32x128xf32>
    %286 = arith.mulf %273, %285 : vector<32x128xf32>
    %287 = arith.truncf %286 : vector<32x128xf32> to vector<32x128xbf16>
    %c1_134 = arith.constant 1 : index
    %c0_135 = arith.constant 0 : index
    %c0_136 = arith.constant 0 : index
    %288 = vector.load %arg13[%c1_134, %c0_135, %c0_136] : memref<2x128x64xbf16, #tpu.memory_space<vmem>>, vector<1x128x64xbf16>
    %289 = vector.shape_cast %288 : vector<1x128x64xbf16> to vector<128x64xbf16>
    %cst_137 = arith.constant dense<0.000000e+00> : vector<32x64xf32>
    %290 = tpu.matmul %287, %289, %cst_137 {dimension_numbers = #tpu.dot_dimension_numbers<[1], [0], [0], [1], [0, 0, 1, 1], [], []>} : vector<32x128xbf16>, vector<128x64xbf16>, vector<32x64xf32> -> vector<32x64xf32>
    %c1_138 = arith.constant 1 : index
    %c0_139 = arith.constant 0 : index
    %c0_140 = arith.constant 0 : index
    %291 = vector.load %arg14[%c1_138, %c0_139, %c0_140] : memref<2x1x64xf32, #tpu.memory_space<vmem>>, vector<1x1x64xf32>
    %292 = vector.shape_cast %291 : vector<1x1x64xf32> to vector<1x64xf32>
    %293 = vector.broadcast %292 : vector<1x64xf32> to vector<32x64xf32>
    %294 = arith.addf %290, %293 : vector<32x64xf32>
    %295 = arith.addf %294, %265 : vector<32x64xf32>
    %c1_141 = arith.constant 1 : index
    %c0_142 = arith.constant 0 : index
    %c0_143 = arith.constant 0 : index
    %296 = vector.load %arg15[%c1_141, %c0_142, %c0_143] : memref<2x1x64xf32, #tpu.memory_space<vmem>>, vector<1x1x64xf32>
    %297 = vector.shape_cast %296 : vector<1x1x64xf32> to vector<1x64xf32>
    %c1_144 = arith.constant 1 : index
    %c0_145 = arith.constant 0 : index
    %c0_146 = arith.constant 0 : index
    %298 = vector.load %arg16[%c1_144, %c0_145, %c0_146] : memref<2x1x64xf32, #tpu.memory_space<vmem>>, vector<1x1x64xf32>
    %299 = vector.shape_cast %298 : vector<1x1x64xf32> to vector<1x64xf32>
    %cst_147 = arith.constant dense<0.000000e+00> : vector<32xf32>
    %300 = vector.multi_reduction <add>, %295, %cst_147 [1] : vector<32x64xf32> to vector<32xf32>
    %301 = vector.shape_cast %300 : vector<32xf32> to vector<32x1xf32>
    %cst_148 = arith.constant 6.400000e+01 : f32
    %302 = vector.broadcast %cst_148 : f32 to vector<32x1xf32>
    %303 = arith.divf %301, %302 : vector<32x1xf32>
    %304 = vector.broadcast %303 : vector<32x1xf32> to vector<32x64xf32>
    %305 = arith.subf %295, %304 : vector<32x64xf32>
    %306 = arith.mulf %305, %305 : vector<32x64xf32>
    %cst_149 = arith.constant dense<0.000000e+00> : vector<32xf32>
    %307 = vector.multi_reduction <add>, %306, %cst_149 [1] : vector<32x64xf32> to vector<32xf32>
    %308 = vector.shape_cast %307 : vector<32xf32> to vector<32x1xf32>
    %cst_150 = arith.constant 6.400000e+01 : f32
    %309 = vector.broadcast %cst_150 : f32 to vector<32x1xf32>
    %310 = arith.divf %308, %309 : vector<32x1xf32>
    %311 = vector.broadcast %303 : vector<32x1xf32> to vector<32x64xf32>
    %312 = arith.subf %295, %311 : vector<32x64xf32>
    %cst_151 = arith.constant 9.99999996E-13 : f32
    %313 = vector.broadcast %cst_151 : f32 to vector<32x1xf32>
    %314 = arith.addf %310, %313 : vector<32x1xf32>
    %315 = math.rsqrt %314 : vector<32x1xf32>
    %316 = vector.broadcast %315 : vector<32x1xf32> to vector<32x64xf32>
    %317 = arith.mulf %312, %316 : vector<32x64xf32>
    %318 = vector.broadcast %297 : vector<1x64xf32> to vector<32x64xf32>
    %319 = arith.mulf %317, %318 : vector<32x64xf32>
    %320 = vector.broadcast %299 : vector<1x64xf32> to vector<32x64xf32>
    %321 = arith.addf %319, %320 : vector<32x64xf32>
    %c0_152 = arith.constant 0 : index
    %c0_153 = arith.constant 0 : index
    %322 = vector.load %arg19[%c0_152, %c0_153] : memref<32x64xf32, #tpu.memory_space<vmem>>, vector<32x64xf32>
    tpu.vector_store %arg19[%c0_152, %c0_153], %321 {strides = array<i32>} : memref<32x64xf32, #tpu.memory_space<vmem>>, vector<32x64xf32>,
    %323 = arith.truncf %321 : vector<32x64xf32> to vector<32x64xbf16>
    %c0_154 = arith.constant 0 : index
    %c0_155 = arith.constant 0 : index
    %324 = vector.load %arg17[%c0_154, %c0_155] : memref<64x64xbf16, #tpu.memory_space<vmem>>, vector<64x64xbf16>
    %cst_156 = arith.constant dense<0.000000e+00> : vector<32x64xf32>
    %325 = tpu.matmul %323, %324, %cst_156 {dimension_numbers = #tpu.dot_dimension_numbers<[1], [0], [0], [1], [0, 0, 1, 1], [], []>} : vector<32x64xbf16>, vector<64x64xbf16>, vector<32x64xf32> -> vector<32x64xf32>
    %c0_157 = arith.constant 0 : index
    %c0_158 = arith.constant 0 : index
    %326 = vector.load %arg18[%c0_157, %c0_158] : memref<1x64xf32, #tpu.memory_space<vmem>>, vector<1x64xf32>
    %327 = vector.broadcast %326 : vector<1x64xf32> to vector<32x64xf32>
    %328 = arith.addf %325, %327 : vector<32x64xf32>
    %329 = math.tanh %328 : vector<32x64xf32>
    %c0_159 = arith.constant 0 : index
    %c0_160 = arith.constant 0 : index
    %330 = vector.load %arg20[%c0_159, %c0_160] : memref<32x64xf32, #tpu.memory_space<vmem>>, vector<32x64xf32>
    tpu.vector_store %arg20[%c0_159, %c0_160], %329 {strides = array<i32>} : memref<32x64xf32, #tpu.memory_space<vmem>>, vector<32x64xf32>,
    return
  }
  func.func @transform_0(%arg0: i32) -> (i32, i32) {
    %c0_i32 = arith.constant 0 : i32
    %c0_i32_0 = arith.constant 0 : i32
    %c0_i32_1 = arith.constant 0 : i32
    return %c0_i32, %c0_i32_0 : i32, i32
  }
  func.func @transform_1(%arg0: i32) -> (i32, i32) {
    %c0_i32 = arith.constant 0 : i32
    %c0_i32_0 = arith.constant 0 : i32
    %c0_i32_1 = arith.constant 0 : i32
    return %c0_i32, %c0_i32_0 : i32, i32
  }
  func.func @transform_2(%arg0: i32) -> (i32, i32) {
    %c0_i32 = arith.constant 0 : i32
    %c0_i32_0 = arith.constant 0 : i32
    %c0_i32_1 = arith.constant 0 : i32
    return %c0_i32, %c0_i32_0 : i32, i32
  }
  func.func @transform_3(%arg0: i32) -> (i32, i32) {
    %c0_i32 = arith.constant 0 : i32
    %c0_i32_0 = arith.constant 0 : i32
    %c0_i32_1 = arith.constant 0 : i32
    return %c0_i32, %c0_i32_0 : i32, i32
  }
  func.func @transform_4(%arg0: i32) -> (i32, i32, i32) {
    %c0_i32 = arith.constant 0 : i32
    %c0_i32_0 = arith.constant 0 : i32
    %c0_i32_1 = arith.constant 0 : i32
    %c0_i32_2 = arith.constant 0 : i32
    return %c0_i32, %c0_i32_0, %c0_i32_1 : i32, i32, i32
  }
  func.func @transform_5(%arg0: i32) -> (i32, i32, i32) {
    %c0_i32 = arith.constant 0 : i32
    %c0_i32_0 = arith.constant 0 : i32
    %c0_i32_1 = arith.constant 0 : i32
    %c0_i32_2 = arith.constant 0 : i32
    return %c0_i32, %c0_i32_0, %c0_i32_1 : i32, i32, i32
  }
  func.func @transform_6(%arg0: i32) -> (i32, i32, i32) {
    %c0_i32 = arith.constant 0 : i32
    %c0_i32_0 = arith.constant 0 : i32
    %c0_i32_1 = arith.constant 0 : i32
    %c0_i32_2 = arith.constant 0 : i32
    return %c0_i32, %c0_i32_0, %c0_i32_1 : i32, i32, i32
  }
  func.func @transform_7(%arg0: i32) -> (i32, i32, i32) {
    %c0_i32 = arith.constant 0 : i32
    %c0_i32_0 = arith.constant 0 : i32
    %c0_i32_1 = arith.constant 0 : i32
    %c0_i32_2 = arith.constant 0 : i32
    return %c0_i32, %c0_i32_0, %c0_i32_1 : i32, i32, i32
  }
  func.func @transform_8(%arg0: i32) -> (i32, i32, i32) {
    %c0_i32 = arith.constant 0 : i32
    %c0_i32_0 = arith.constant 0 : i32
    %c0_i32_1 = arith.constant 0 : i32
    %c0_i32_2 = arith.constant 0 : i32
    return %c0_i32, %c0_i32_0, %c0_i32_1 : i32, i32, i32
  }
  func.func @transform_9(%arg0: i32) -> (i32, i32, i32) {
    %c0_i32 = arith.constant 0 : i32
    %c0_i32_0 = arith.constant 0 : i32
    %c0_i32_1 = arith.constant 0 : i32
    %c0_i32_2 = arith.constant 0 : i32
    return %c0_i32, %c0_i32_0, %c0_i32_1 : i32, i32, i32
  }
  func.func @transform_10(%arg0: i32) -> (i32, i32, i32) {
    %c0_i32 = arith.constant 0 : i32
    %c0_i32_0 = arith.constant 0 : i32
    %c0_i32_1 = arith.constant 0 : i32
    %c0_i32_2 = arith.constant 0 : i32
    return %c0_i32, %c0_i32_0, %c0_i32_1 : i32, i32, i32
  }
  func.func @transform_11(%arg0: i32) -> (i32, i32, i32) {
    %c0_i32 = arith.constant 0 : i32
    %c0_i32_0 = arith.constant 0 : i32
    %c0_i32_1 = arith.constant 0 : i32
    %c0_i32_2 = arith.constant 0 : i32
    return %c0_i32, %c0_i32_0, %c0_i32_1 : i32, i32, i32
  }
  func.func @transform_12(%arg0: i32) -> (i32, i32, i32) {
    %c0_i32 = arith.constant 0 : i32
    %c0_i32_0 = arith.constant 0 : i32
    %c0_i32_1 = arith.constant 0 : i32
    %c0_i32_2 = arith.constant 0 : i32
    return %c0_i32, %c0_i32_0, %c0_i32_1 : i32, i32, i32
  }
  func.func @transform_13(%arg0: i32) -> (i32, i32, i32) {
    %c0_i32 = arith.constant 0 : i32
    %c0_i32_0 = arith.constant 0 : i32
    %c0_i32_1 = arith.constant 0 : i32
    %c0_i32_2 = arith.constant 0 : i32
    return %c0_i32, %c0_i32_0, %c0_i32_1 : i32, i32, i32
  }
  func.func @transform_14(%arg0: i32) -> (i32, i32, i32) {
    %c0_i32 = arith.constant 0 : i32
    %c0_i32_0 = arith.constant 0 : i32
    %c0_i32_1 = arith.constant 0 : i32
    %c0_i32_2 = arith.constant 0 : i32
    return %c0_i32, %c0_i32_0, %c0_i32_1 : i32, i32, i32
  }
  func.func @transform_15(%arg0: i32) -> (i32, i32, i32) {
    %c0_i32 = arith.constant 0 : i32
    %c0_i32_0 = arith.constant 0 : i32
    %c0_i32_1 = arith.constant 0 : i32
    %c0_i32_2 = arith.constant 0 : i32
    return %c0_i32, %c0_i32_0, %c0_i32_1 : i32, i32, i32
  }
  func.func @transform_16(%arg0: i32) -> (i32, i32) {
    %c0_i32 = arith.constant 0 : i32
    %c0_i32_0 = arith.constant 0 : i32
    %c0_i32_1 = arith.constant 0 : i32
    return %c0_i32, %c0_i32_0 : i32, i32
  }
  func.func @transform_17(%arg0: i32) -> (i32, i32) {
    %c0_i32 = arith.constant 0 : i32
    %c0_i32_0 = arith.constant 0 : i32
    %c0_i32_1 = arith.constant 0 : i32
    return %c0_i32, %c0_i32_0 : i32, i32
  }
  func.func @transform_18(%arg0: i32) -> (i32, i32) {
    %c0_i32 = arith.constant 0 : i32
    %c0_i32_0 = arith.constant 0 : i32
    %c0_i32_1 = arith.constant 0 : i32
    return %c0_i32, %c0_i32_0 : i32, i32
  }
  func.func @transform_19(%arg0: i32) -> (i32, i32) {
    %c0_i32 = arith.constant 0 : i32
    %c0_i32_0 = arith.constant 0 : i32
    %c0_i32_1 = arith.constant 0 : i32
    return %c0_i32, %c0_i32_0 : i32, i32
  }
  func.func @transform_20(%arg0: i32) -> (i32, i32, i32, i32) {
    %c0_i32 = arith.constant 0 : i32
    %c0_i32_0 = arith.constant 0 : i32
    %c0_i32_1 = arith.constant 0 : i32
    %c0_i32_2 = arith.constant 0 : i32
    %c0_i32_3 = arith.constant 0 : i32
    return %c0_i32, %c0_i32_0, %c0_i32_1, %c0_i32_2 : i32, i32, i32, i32
  }
}

</mosaic_0001>

<llo_original>
// kernel: bert_forward.1
$region0: #{bert_forward.1}
  #allocation0 [shape = 'u32[]', space=smem, size = 0x4, offset = 0x4, fixed_abs, tag = 'smem constant byte address 0x4 - core index']
  #allocation1 [shape = 'u32[72,128]{1,0:T(1,128)}', space=vmem, size = 0x9000, scoped, tag = 'internal scratch']
  %s0 = inlined_call_operand.vmem [shape: f32[32,64], index: 0, kind: input, shape index: {}]
  %s1 = inlined_call_operand.vmem [shape: f32[32,32], index: 1, kind: input, shape index: {}]
  %s2 = inlined_call_operand.vmem [shape: f32[1,64], index: 2, kind: input, shape index: {}]
  %s3 = inlined_call_operand.vmem [shape: f32[1,64], index: 3, kind: input, shape index: {}]
  %s4 = inlined_call_operand.vmem [shape: bf16[2,64,192], index: 4, kind: input, shape index: {}]
  %s5 = inlined_call_operand.vmem [shape: f32[2,1,192], index: 5, kind: input, shape index: {}]
  %s6 = inlined_call_operand.vmem [shape: bf16[2,64,64], index: 6, kind: input, shape index: {}]
  %s7 = inlined_call_operand.vmem [shape: f32[2,1,64], index: 7, kind: input, shape index: {}]
  %s8 = inlined_call_operand.vmem [shape: f32[2,1,64], index: 8, kind: input, shape index: {}]
  %s9 = inlined_call_operand.vmem [shape: f32[2,1,64], index: 9, kind: input, shape index: {}]
  %s10 = inlined_call_operand.vmem [shape: bf16[2,64,128], index: 10, kind: input, shape index: {}]
  %s11 = inlined_call_operand.vmem [shape: f32[2,1,128], index: 11, kind: input, shape index: {}]
  %s12 = inlined_call_operand.vmem [shape: bf16[2,128,64], index: 12, kind: input, shape index: {}]
  %s13 = inlined_call_operand.vmem [shape: f32[2,1,64], index: 13, kind: input, shape index: {}]
  %s14 = inlined_call_operand.vmem [shape: f32[2,1,64], index: 14, kind: input, shape index: {}]
  %s15 = inlined_call_operand.vmem [shape: f32[2,1,64], index: 15, kind: input, shape index: {}]
  %s16 = inlined_call_operand.vmem [shape: bf16[64,64], index: 16, kind: input, shape index: {}]
  %s17 = inlined_call_operand.vmem [shape: f32[1,64], index: 17, kind: input, shape index: {}]
  %s18 = inlined_call_operand.hbm [shape: f32[32,64], index: 18, kind: output, shape index: {0}]
  %s19 = inlined_call_operand.vmem [shape: f32[32,64], index: 19, kind: output, shape index: {1}]
  %s20 = inlined_call_operand.vmem [shape: f32[2,2,32,32], index: 20, kind: output, shape index: {2}]
  %21 = xla_tuple %s18, %s19, %s20
  %s22 = sld [smem:[#allocation0]]
  $region98: #{bert_forward.1} parent=0
    _
  %s24 = ssub.s32 1, %s22
  %s25 = scalar_select 0, %s24, %s22
  $region1: #{bert_forward.1} parent=0
    #allocation2 [shape = 'u8[16384]{0}', space=vmem, size = 0x4000, scoped, tag = 'output window, operand 0, single buffered']
    #allocation3 [shape = 's32[1]{0}', space=sflag, size = 0x4, scoped, tag = 'scoped memory for bert_forward.1']
    %26 = vsyncpa [#allocation3], 0
    // Predicated region
    $region2: #{bert_forward.1} parent=1 // pred_check
      _
    $region3: #{bert_forward.1} parent=1 // pred_check_branch
      %28 = sbr.rel (0) target = $region5
    $region4: #{bert_forward.1} parent=1 // pred_region
      _
    $region5: #{bert_forward.1} parent=1 // pred_fallthru
      _
    // Predicated region
    $region6: #{bert_forward.1} parent=1 // pred_check
      _
    $region7: #{bert_forward.1} parent=1 // pred_check_branch
      %30 = sbr.rel (0) target = $region9
    $region8: #{bert_forward.1} parent=1 // pred_region
      _
    $region9: #{bert_forward.1} parent=1 // pred_fallthru
      _
    // Predicated region
    $region10: #{bert_forward.1} parent=1 // pred_check
      _
    $region11: #{bert_forward.1} parent=1 // pred_check_branch
      %32 = sbr.rel (0) target = $region13
    $region12: #{bert_forward.1} parent=1 // pred_region
      _
    $region13: #{bert_forward.1} parent=1 // pred_fallthru
      _
    // Predicated region
    $region14: #{bert_forward.1} parent=1 // pred_check
      _
    $region15: #{bert_forward.1} parent=1 // pred_check_branch
      %34 = sbr.rel (0) target = $region17
    $region16: #{bert_forward.1} parent=1 // pred_region
      _
    $region17: #{bert_forward.1} parent=1 // pred_fallthru
      _
    // Predicated region
    $region18: #{bert_forward.1} parent=1 // pred_check
      _
    $region19: #{bert_forward.1} parent=1 // pred_check_branch
      %36 = sbr.rel (0) target = $region21
    $region20: #{bert_forward.1} parent=1 // pred_region
      _
    $region21: #{bert_forward.1} parent=1 // pred_fallthru
      _
    // Predicated region
    $region22: #{bert_forward.1} parent=1 // pred_check
      _
    $region23: #{bert_forward.1} parent=1 // pred_check_branch
      %38 = sbr.rel (0) target = $region25
    $region24: #{bert_forward.1} parent=1 // pred_region
      _
    $region25: #{bert_forward.1} parent=1 // pred_fallthru
      _
    // Predicated region
    $region26: #{bert_forward.1} parent=1 // pred_check
      _
    $region27: #{bert_forward.1} parent=1 // pred_check_branch
      %40 = sbr.rel (0) target = $region29
    $region28: #{bert_forward.1} parent=1 // pred_region
      _
    $region29: #{bert_forward.1} parent=1 // pred_fallthru
      _
    // Predicated region
    $region30: #{bert_forward.1} parent=1 // pred_check
      _
    $region31: #{bert_forward.1} parent=1 // pred_check_branch
      %42 = sbr.rel (0) target = $region33
    $region32: #{bert_forward.1} parent=1 // pred_region
      _
    $region33: #{bert_forward.1} parent=1 // pred_fallthru
      _
    // Predicated region
    $region34: #{bert_forward.1} parent=1 // pred_check
      _
    $region35: #{bert_forward.1} parent=1 // pred_check_branch
      %44 = sbr.rel (0) target = $region37
    $region36: #{bert_forward.1} parent=1 // pred_region
      _
    $region37: #{bert_forward.1} parent=1 // pred_fallthru
      _
    // Predicated region
    $region38: #{bert_forward.1} parent=1 // pred_check
      _
    $region39: #{bert_forward.1} parent=1 // pred_check_branch
      %46 = sbr.rel (0) target = $region41
    $region40: #{bert_forward.1} parent=1 // pred_region
      _
    $region41: #{bert_forward.1} parent=1 // pred_fallthru
      _
    // Predicated region
    $region42: #{bert_forward.1} parent=1 // pred_check
      _
    $region43: #{bert_forward.1} parent=1 // pred_check_branch
      %48 = sbr.rel (0) target = $region45
    $region44: #{bert_forward.1} parent=1 // pred_region
      _
    $region45: #{bert_forward.1} parent=1 // pred_fallthru
      _
    // Predicated region
    $region46: #{bert_forward.1} parent=1 // pred_check
      _
    $region47: #{bert_forward.1} parent=1 // pred_check_branch
      %50 = sbr.rel (0) target = $region49
    $region48: #{bert_forward.1} parent=1 // pred_region
      _
    $region49: #{bert_forward.1} parent=1 // pred_fallthru
      _
    // Predicated region
    $region50: #{bert_forward.1} parent=1 // pred_check
      _
    $region51: #{bert_forward.1} parent=1 // pred_check_branch
      %52 = sbr.rel (0) target = $region53
    $region52: #{bert_forward.1} parent=1 // pred_region
      _
    $region53: #{bert_forward.1} parent=1 // pred_fallthru
      _
    // Predicated region
    $region54: #{bert_forward.1} parent=1 // pred_check
      _
    $region55: #{bert_forward.1} parent=1 // pred_check_branch
      %54 = sbr.rel (0) target = $region57
    $region56: #{bert_forward.1} parent=1 // pred_region
      _
    $region57: #{bert_forward.1} parent=1 // pred_fallthru
      _
    // Predicated region
    $region58: #{bert_forward.1} parent=1 // pred_check
      _
    $region59: #{bert_forward.1} parent=1 // pred_check_branch
      %56 = sbr.rel (0) target = $region61
    $region60: #{bert_forward.1} parent=1 // pred_region
      _
    $region61: #{bert_forward.1} parent=1 // pred_fallthru
      _
    // Predicated region
    $region62: #{bert_forward.1} parent=1 // pred_check
      _
    $region63: #{bert_forward.1} parent=1 // pred_check_branch
      %58 = sbr.rel (0) target = $region65
    $region64: #{bert_forward.1} parent=1 // pred_region
      _
    $region65: #{bert_forward.1} parent=1 // pred_fallthru
      _
    // Predicated region
    $region66: #{bert_forward.1} parent=1 // pred_check
      _
    $region67: #{bert_forward.1} parent=1 // pred_check_branch
      %60 = sbr.rel (0) target = $region69
    $region68: #{bert_forward.1} parent=1 // pred_region
      _
    $region69: #{bert_forward.1} parent=1 // pred_fallthru
      _
    // Predicated region
    $region70: #{bert_forward.1} parent=1 // pred_check
      _
    $region71: #{bert_forward.1} parent=1 // pred_check_branch
      %62 = sbr.rel (0) target = $region73
    $region72: #{bert_forward.1} parent=1 // pred_region
      _
    $region73: #{bert_forward.1} parent=1 // pred_fallthru
      _
    %v64 = vld [vmem:[%s1] sm:$0xff]
    %v65 = vld [vmem:[%s1 + $0x8] sm:$0xff]
    %v66 = vld [vmem:[%s1 + $0x10] sm:$0xff]
    %v67 = vld [vmem:[%s1 + $0x18] sm:$0xff]
    %v68 = vld [vmem:[%s0] sm:$0xff]
    %v69 = vld [vmem:[%s0 + $0x8] sm:$0xff]
    %v70 = vld [vmem:[%s0 + $0x10] sm:$0xff]
    %v71 = vld [vmem:[%s0 + $0x18] sm:$0xff]
    %v72 = vld [vmem:[%s2] sm:$0x1]
    %v73 = vld [vmem:[%s3] sm:$0x1]
    %vm74 = vcmask 523264
    %v75 = vsel %vm74, %v68, 0.0
    %76 = vadd.xlane.f32.xlu0 %v75
    %v77 = vpop.xlane.xlu0 %76
    %v78 = vsel %vm74, %v69, 0.0
    %79 = vadd.xlane.f32.xlu0 %v78
    %v80 = vpop.xlane.xlu0 %79
    %v81 = vsel %vm74, %v70, 0.0
    %82 = vadd.xlane.f32.xlu0 %v81
    %v83 = vpop.xlane.xlu0 %82
    %v84 = vsel %vm74, %v71, 0.0
    %85 = vadd.xlane.f32.xlu0 %v84
    %v86 = vpop.xlane.xlu0 %85
    %v87 = vrcp.pop 64.0
    %v88 = vmul.f32 64.0, %v87
    %v89 = vsub.f32 1.0, %v88
    %v90 = vmul.f32 %v87, %v89
    %v91 = vadd.f32 %v87, %v90
    %vm92 = vweird.f32 %v87
    %v93 = vsel %vm92, %v87, %v91
    %v94 = vmul.f32 %v77, %v93
    %v95 = vmul.f32 %v80, %v93
    %v96 = vmul.f32 %v83, %v93
    %v97 = vmul.f32 %v86, %v93
    %v98 = vsub.f32 %v68, %v94
    %v99 = vsub.f32 %v69, %v95
    %v100 = vsub.f32 %v70, %v96
    %v101 = vsub.f32 %v71, %v97
    %v102 = vmul.f32 %v98, %v98
    %v103 = vmul.f32 %v99, %v99
    %v104 = vmul.f32 %v100, %v100
    %v105 = vmul.f32 %v101, %v101
    %v106 = vsel %vm74, %v102, 0.0
    %107 = vadd.xlane.f32.xlu0 %v106
    %v108 = vpop.xlane.xlu0 %107
    %v109 = vsel %vm74, %v103, 0.0
    %110 = vadd.xlane.f32.xlu0 %v109
    %v111 = vpop.xlane.xlu0 %110
    %v112 = vsel %vm74, %v104, 0.0
    %113 = vadd.xlane.f32.xlu0 %v112
    %v114 = vpop.xlane.xlu0 %113
    %v115 = vsel %vm74, %v105, 0.0
    %116 = vadd.xlane.f32.xlu0 %v115
    %v117 = vpop.xlane.xlu0 %116
    %v118 = vmul.f32 %v108, %v93
    %v119 = vmul.f32 %v111, %v93
    %v120 = vmul.f32 %v114, %v93
    %v121 = vmul.f32 %v117, %v93
    %v122 = vadd.f32 %v118, 1e-12
    %v123 = vadd.f32 %v119, 1e-12
    %v124 = vadd.f32 %v120, 1e-12
    %v125 = vadd.f32 %v121, 1e-12
    %v126 = vrsqrt.pop %v122
    %v127 = vmul.f32 %v126, %v122
    %v128 = vmul.f32 %v127, %v126
    %v129 = vmul.f32 0.5, %v128
    %v130 = vsub.f32 1.5, %v129
    %v131 = vmul.f32 %v126, %v130
    %vm132 = vweird.f32 %v122
    %vm133 = vweird.f32 %v126
    %vm134 = vmor %vm132, %vm133
    %v135 = vsel %vm134, %v126, %v131
    %v136 = vrsqrt.pop %v123
    %v137 = vmul.f32 %v136, %v123
    %v138 = vmul.f32 %v137, %v136
    %v139 = vmul.f32 0.5, %v138
    %v140 = vsub.f32 1.5, %v139
    %v141 = vmul.f32 %v136, %v140
    %vm142 = vweird.f32 %v123
    %vm143 = vweird.f32 %v136
    %vm144 = vmor %vm142, %vm143
    %v145 = vsel %vm144, %v136, %v141
    %v146 = vrsqrt.pop %v124
    %v147 = vmul.f32 %v146, %v124
    %v148 = vmul.f32 %v147, %v146
    %v149 = vmul.f32 0.5, %v148
    %v150 = vsub.f32 1.5, %v149
    %v151 = vmul.f32 %v146, %v150
    %vm152 = vweird.f32 %v124
    %vm153 = vweird.f32 %v146
    %vm154 = vmor %vm152, %vm153
    %v155 = vsel %vm154, %v146, %v151
    %v156 = vrsqrt.pop %v125
    %v157 = vmul.f32 %v156, %v125
    %v158 = vmul.f32 %v157, %v156
    %v159 = vmul.f32 0.5, %v158
    %v160 = vsub.f32 1.5, %v159
    %v161 = vmul.f32 %v156, %v160
    %vm162 = vweird.f32 %v125
    %vm163 = vweird.f32 %v156
    %vm164 = vmor %vm162, %vm163
    %v165 = vsel %vm164, %v156, %v161
    %v166 = vmul.f32 %v98, %v135
    %v167 = vmul.f32 %v99, %v145
    %v168 = vmul.f32 %v100, %v155
    %v169 = vmul.f32 %v101, %v165
    %v171 = vperm.slane %v72, 0
    %v173 = vmul.f32 %v166, %v171
    %v174 = vmul.f32 %v167, %v171
    %v175 = vmul.f32 %v168, %v171
    %v176 = vmul.f32 %v169, %v171
    %v178 = vperm.slane %v73, 0
    %v180 = vadd.f32 %v173, %v178
    %v181 = vadd.f32 %v174, %v178
    %v182 = vadd.f32 %v175, %v178
    %v183 = vadd.f32 %v176, %v178
    %v184 = vpack.c.bf16 %v181, %v180
    %v185 = vpack.c.bf16 %v183, %v182
    %v186 = vld [vmem:[%s4] sm:$0xff]
    %v187 = vld [vmem:[%s4 + $0x8] sm:$0xff]
    %v188 = vld [vmem:[%s4 + $0x10] sm:$0xff]
    %v189 = vld [vmem:[%s4 + $0x18] sm:$0xff]
    %v190 = vld [vmem:[%s4 + $0x20] sm:$0xff]
    %v191 = vld [vmem:[%s4 + $0x28] sm:$0xff]
    %v192 = vld [vmem:[%s4 + $0x30] sm:$0xff]
    %v193 = vld [vmem:[%s4 + $0x38] sm:$0xff]
    %v194 = vld [vmem:[%s5] sm:$0x3]
    %v196 = vperm.slane %v194, 0
    %v197 = vperm.slane %v194, 1
    %v208 = vunpack.c.l.b16 %v186
    %v209 = vunpack.c.h.b16 %v186
    %v210 = vunpack.c.l.b16 %v187
    %v211 = vunpack.c.h.b16 %v187
    %v212 = vunpack.c.l.b16 %v188
    %v213 = vunpack.c.h.b16 %v188
    %v214 = vunpack.c.l.b16 %v189
    %v215 = vunpack.c.h.b16 %v189
    %v216 = vunpack.c.l.b16 %v190
    %v217 = vunpack.c.h.b16 %v190
    %v218 = vunpack.c.l.b16 %v191
    %v219 = vunpack.c.h.b16 %v191
    %v220 = vunpack.c.l.b16 %v192
    %v221 = vunpack.c.h.b16 %v192
    %v222 = vunpack.c.l.b16 %v193
    %v223 = vunpack.c.h.b16 %v193
    %v224 = vpack.c.b16 %v210, %v208
    %v225 = vpack.c.b16 %v211, %v209
    %v226 = vpack.c.b16 %v214, %v212
    %v227 = vpack.c.b16 %v215, %v213
    %v228 = vpack.c.b16 %v218, %v216
    %v229 = vpack.c.b16 %v219, %v217
    %v230 = vpack.c.b16 %v222, %v220
    %v231 = vpack.c.b16 %v223, %v221
    %v241 = vsel %vm74, %v184, 0
    %v244 = vsel %vm74, %v185, 0
    %246 = vmatpush.bf16.msra.mxu0 0
    %247 = vmatpush.bf16.msra.mxu0 0
    %248 = vmatpush.bf16.msra.mxu0 0
    %249 = vmatpush.bf16.msra.mxu0 0
    %250 = vmatpush.bf16.msra.mxu0 %v230
    %251 = vmatpush.bf16.msra.mxu0 %v228
    %252 = vmatpush.bf16.msra.mxu0 %v226
    %253 = vmatpush.bf16.msra.mxu0 %v224
    %254 = vmatmul.bf16.gmra.mxu0 %v241
    %v255 = vpop.f32.mrf.mxu0
    %v256 = vadd.f32 %v196, %v255
    %v257 = vpop.f32.mrf.mxu0
    %v258 = vadd.f32 %v196, %v257
    %259 = vmatmul.bf16.gmra.mxu0 %v244
    %v260 = vpop.f32.mrf.mxu0
    %v261 = vadd.f32 %v196, %v260
    %v262 = vpop.f32.mrf.mxu0
    %v263 = vadd.f32 %v196, %v262
    %264 = vdwg.mxu0
    %265 = vmatpush.bf16.msra.mxu0 0
    %266 = vmatpush.bf16.msra.mxu0 0
    %267 = vmatpush.bf16.msra.mxu0 0
    %268 = vmatpush.bf16.msra.mxu0 0
    %269 = vmatpush.bf16.msra.mxu0 %v231
    %270 = vmatpush.bf16.msra.mxu0 %v229
    %271 = vmatpush.bf16.msra.mxu0 %v227
    %272 = vmatpush.bf16.msra.mxu0 %v225
    %273 = vmatmul.bf16.gmra.mxu0 %v241
    %v274 = vpop.f32.mrf.mxu0
    %v275 = vadd.f32 %v197, %v274
    %v276 = vpop.f32.mrf.mxu0
    %v277 = vadd.f32 %v197, %v276
    %278 = vmatmul.bf16.gmra.mxu0 %v244
    %v279 = vpop.f32.mrf.mxu0
    %v280 = vadd.f32 %v197, %v279
    %v281 = vpop.f32.mrf.mxu0
    %v282 = vadd.f32 %v197, %v281
    %283 = vdwg.mxu0
    %v284 = vpack.c.bf16 %v275, %v256
    %v285 = vpack.c.bf16 %v277, %v258
    %v286 = vpack.c.bf16 %v280, %v261
    %v287 = vpack.c.bf16 %v282, %v263
    %v288 = vld [vmem:[%s6] sm:$0xf]
    %v289 = vld [vmem:[%s6 + $0x4] sm:$0xf]
    %v290 = vld [vmem:[%s6 + $0x8] sm:$0xf]
    %v291 = vld [vmem:[%s6 + $0xc] sm:$0xf]
    %v292 = vld [vmem:[%s6 + $0x10] sm:$0xf]
    %v293 = vld [vmem:[%s6 + $0x14] sm:$0xf]
    %v294 = vld [vmem:[%s6 + $0x18] sm:$0xf]
    %v295 = vld [vmem:[%s6 + $0x1c] sm:$0xf]
    %v300 = vunpack.c.l.b16 %v284
    %v301 = vunpack.c.l.b16 %v285
    %v302 = vunpack.c.l.b16 %v286
    %v303 = vunpack.c.l.b16 %v287
    %v304 = vpack.c.b16 %v301, %v300
    %v305 = vpack.c.b16 %v303, %v302
    %306 = vrot.lane.b32.xlu0 %v304, 64
    %v307 = vpop.permute.xlu0 %306
    %308 = vrot.lane.b32.xlu0 %v305, 64
    %v309 = vpop.permute.xlu0 %308
    %vm310 = vcmask 261120
    %v312 = vsel %vm310, %v304, 0
    %v315 = vsel %vm310, %v305, 0
    %v318 = vsel %vm310, %v307, 0
    %v321 = vsel %vm310, %v309, 0
    %323 = vmatpush.bf16.xpose.msra.mxu0 0
    %324 = vmatpush.bf16.xpose.msra.mxu0 0
    %325 = vmatpush.bf16.xpose.msra.mxu0 0
    %326 = vmatpush.bf16.xpose.msra.mxu0 0
    %327 = vmatpush.bf16.xpose.msra.mxu0 0
    %328 = vmatpush.bf16.xpose.msra.mxu0 0
    %329 = vmatpush.bf16.xpose.msra.mxu0 %v321
    %330 = vmatpush.bf16.xpose.msra.mxu0 %v318
    %331 = vmatmul.bf16.gmra.mxu0 %v312
    %v332 = vpop.f32.mrf.mxu0
    %v333 = vadd.f32 %v64, %v332
    %v334 = vpop.f32.mrf.mxu0
    %v335 = vadd.f32 %v65, %v334
    %336 = vmatmul.bf16.gmra.mxu0 %v315
    %v337 = vpop.f32.mrf.mxu0
    %v338 = vadd.f32 %v66, %v337
    %v339 = vpop.f32.mrf.mxu0
    %v340 = vadd.f32 %v67, %v339
    %341 = vdwg.mxu0
    %v342 = vsel %vm310, %v333, -inf
    %343 = vmax.xlane.f32.xlu0 %v342
    %v344 = vpop.xlane.xlu0 %343
    %v345 = vsel %vm310, %v335, -inf
    %346 = vmax.xlane.f32.xlu0 %v345
    %v347 = vpop.xlane.xlu0 %346
    %v348 = vsel %vm310, %v338, -inf
    %349 = vmax.xlane.f32.xlu0 %v348
    %v350 = vpop.xlane.xlu0 %349
    %v351 = vsel %vm310, %v340, -inf
    %352 = vmax.xlane.f32.xlu0 %v351
    %v353 = vpop.xlane.xlu0 %352
    %v354 = vsub.f32 %v333, %v344
    %v355 = vsub.f32 %v335, %v347
    %v356 = vsub.f32 %v338, %v350
    %v357 = vsub.f32 %v340, %v353
    %v358 = vmul.f32 %v354, 1.442695
    %v359 = vpow.pop %v358
    %v360 = vmul.f32 %v355, 1.442695
    %v361 = vpow.pop %v360
    %v362 = vmul.f32 %v356, 1.442695
    %v363 = vpow.pop %v362
    %v364 = vmul.f32 %v357, 1.442695
    %v365 = vpow.pop %v364
    %v366 = vsel %vm310, %v359, 0.0
    %367 = vadd.xlane.f32.xlu0 %v366
    %v368 = vpop.xlane.xlu0 %367
    %v369 = vsel %vm310, %v361, 0.0
    %370 = vadd.xlane.f32.xlu0 %v369
    %v371 = vpop.xlane.xlu0 %370
    %v372 = vsel %vm310, %v363, 0.0
    %373 = vadd.xlane.f32.xlu0 %v372
    %v374 = vpop.xlane.xlu0 %373
    %v375 = vsel %vm310, %v365, 0.0
    %376 = vadd.xlane.f32.xlu0 %v375
    %v377 = vpop.xlane.xlu0 %376
    %v378 = vrcp.pop %v368
    %v379 = vrcp.pop %v371
    %v380 = vrcp.pop %v374
    %v381 = vrcp.pop %v377
    %v382 = vmul.f32 %v359, %v378
    %v383 = vmul.f32 %v361, %v379
    %v384 = vmul.f32 %v363, %v380
    %v385 = vmul.f32 %v365, %v381
    %386 = vst.msk [vmem:[%s20] sm:$0xff] %vm310, %v382
    %387 = vst.msk [vmem:[%s20 + $0x8] sm:$0xff] %vm310, %v383
    %388 = vst.msk [vmem:[%s20 + $0x10] sm:$0xff] %vm310, %v384
    %389 = vst.msk [vmem:[%s20 + $0x18] sm:$0xff] %vm310, %v385
    %v390 = vpack.c.bf16 %v383, %v382
    %v391 = vpack.c.bf16 %v385, %v384
    %v392 = vunpack.c.h.b16 %v284
    %v393 = vunpack.c.h.b16 %v285
    %v394 = vunpack.c.h.b16 %v286
    %v395 = vunpack.c.h.b16 %v287
    %v396 = vpack.c.b16 %v393, %v392
    %v397 = vpack.c.b16 %v395, %v394
    %v401 = vsel %vm310, %v390, 0
    %v404 = vsel %vm310, %v391, 0
    %406 = vmatpush.bf16.msra.mxu0 0
    %407 = vmatpush.bf16.msra.mxu0 0
    %408 = vmatpush.bf16.msra.mxu0 0
    %409 = vmatpush.bf16.msra.mxu0 0
    %410 = vmatpush.bf16.msra.mxu0 0
    %411 = vmatpush.bf16.msra.mxu0 0
    %412 = vmatpush.bf16.msra.mxu0 %v397
    %413 = vmatpush.bf16.msra.mxu0 %v396
    %414 = vmatmul.bf16.gmra.mxu0 %v401
    %v415 = vpop.f32.mrf.mxu0
    %v416 = vadd.f32 0.0, %v415
    %v417 = vpop.f32.mrf.mxu0
    %v418 = vadd.f32 0.0, %v417
    %419 = vmatmul.bf16.gmra.mxu0 %v404
    %v420 = vpop.f32.mrf.mxu0
    %v421 = vadd.f32 0.0, %v420
    %v422 = vpop.f32.mrf.mxu0
    %v423 = vadd.f32 0.0, %v422
    %424 = vdwg.mxu0
    %v425 = vpack.c.bf16 %v418, %v416
    %v426 = vpack.c.bf16 %v423, %v421
    %427 = vrot.lane.b32.xlu0 %v304, 96
    %v428 = vpop.permute.xlu0 %427
    %429 = vrot.lane.b32.xlu0 %v305, 96
    %v430 = vpop.permute.xlu0 %429
    %431 = vrot.lane.b32.xlu0 %v304, 32
    %v432 = vpop.permute.xlu0 %431
    %433 = vrot.lane.b32.xlu0 %v305, 32
    %v434 = vpop.permute.xlu0 %433
    %v436 = vsel %vm310, %v428, 0
    %v439 = vsel %vm310, %v430, 0
    %v442 = vsel %vm310, %v432, 0
    %v445 = vsel %vm310, %v434, 0
    %447 = vmatpush.bf16.xpose.msra.mxu0 0
    %448 = vmatpush.bf16.xpose.msra.mxu0 0
    %449 = vmatpush.bf16.xpose.msra.mxu0 0
    %450 = vmatpush.bf16.xpose.msra.mxu0 0
    %451 = vmatpush.bf16.xpose.msra.mxu0 0
    %452 = vmatpush.bf16.xpose.msra.mxu0 0
    %453 = vmatpush.bf16.xpose.msra.mxu0 %v445
    %454 = vmatpush.bf16.xpose.msra.mxu0 %v442
    %455 = vmatmul.bf16.gmra.mxu0 %v436
    %v456 = vpop.f32.mrf.mxu0
    %v457 = vadd.f32 %v64, %v456
    %v458 = vpop.f32.mrf.mxu0
    %v459 = vadd.f32 %v65, %v458
    %460 = vmatmul.bf16.gmra.mxu0 %v439
    %v461 = vpop.f32.mrf.mxu0
    %v462 = vadd.f32 %v66, %v461
    %v463 = vpop.f32.mrf.mxu0
    %v464 = vadd.f32 %v67, %v463
    %465 = vdwg.mxu0
    %v466 = vsel %vm310, %v457, -inf
    %467 = vmax.xlane.f32.xlu0 %v466
    %v468 = vpop.xlane.xlu0 %467
    %v469 = vsel %vm310, %v459, -inf
    %470 = vmax.xlane.f32.xlu0 %v469
    %v471 = vpop.xlane.xlu0 %470
    %v472 = vsel %vm310, %v462, -inf
    %473 = vmax.xlane.f32.xlu0 %v472
    %v474 = vpop.xlane.xlu0 %473
    %v475 = vsel %vm310, %v464, -inf
    %476 = vmax.xlane.f32.xlu0 %v475
    %v477 = vpop.xlane.xlu0 %476
    %v478 = vsub.f32 %v457, %v468
    %v479 = vsub.f32 %v459, %v471
    %v480 = vsub.f32 %v462, %v474
    %v481 = vsub.f32 %v464, %v477
    %v482 = vmul.f32 %v478, 1.442695
    %v483 = vpow.pop %v482
    %v484 = vmul.f32 %v479, 1.442695
    %v485 = vpow.pop %v484
    %v486 = vmul.f32 %v480, 1.442695
    %v487 = vpow.pop %v486
    %v488 = vmul.f32 %v481, 1.442695
    %v489 = vpow.pop %v488
    %v490 = vsel %vm310, %v483, 0.0
    %491 = vadd.xlane.f32.xlu0 %v490
    %v492 = vpop.xlane.xlu0 %491
    %v493 = vsel %vm310, %v485, 0.0
    %494 = vadd.xlane.f32.xlu0 %v493
    %v495 = vpop.xlane.xlu0 %494
    %v496 = vsel %vm310, %v487, 0.0
    %497 = vadd.xlane.f32.xlu0 %v496
    %v498 = vpop.xlane.xlu0 %497
    %v499 = vsel %vm310, %v489, 0.0
    %500 = vadd.xlane.f32.xlu0 %v499
    %v501 = vpop.xlane.xlu0 %500
    %v502 = vrcp.pop %v492
    %v503 = vrcp.pop %v495
    %v504 = vrcp.pop %v498
    %v505 = vrcp.pop %v501
    %v506 = vmul.f32 %v483, %v502
    %v507 = vmul.f32 %v485, %v503
    %v508 = vmul.f32 %v487, %v504
    %v509 = vmul.f32 %v489, %v505
    %s510 = scalar_lea.vmem %s20, 32
    %511 = vst.msk [vmem:[%s510] sm:$0xff] %vm310, %v506
    %512 = vst.msk [vmem:[%s510 + $0x8] sm:$0xff] %vm310, %v507
    %513 = vst.msk [vmem:[%s510 + $0x10] sm:$0xff] %vm310, %v508
    %514 = vst.msk [vmem:[%s510 + $0x18] sm:$0xff] %vm310, %v509
    %v515 = vpack.c.bf16 %v507, %v506
    %v516 = vpack.c.bf16 %v509, %v508
    %517 = vrot.lane.b32.xlu0 %v396, 96
    %v518 = vpop.permute.xlu0 %517
    %519 = vrot.lane.b32.xlu0 %v397, 96
    %v520 = vpop.permute.xlu0 %519
    %v524 = vsel %vm310, %v515, 0
    %v527 = vsel %vm310, %v516, 0
    %529 = vmatpush.bf16.msra.mxu0 0
    %530 = vmatpush.bf16.msra.mxu0 0
    %531 = vmatpush.bf16.msra.mxu0 0
    %532 = vmatpush.bf16.msra.mxu0 0
    %533 = vmatpush.bf16.msra.mxu0 0
    %534 = vmatpush.bf16.msra.mxu0 0
    %535 = vmatpush.bf16.msra.mxu0 %v520
    %536 = vmatpush.bf16.msra.mxu0 %v518
    %537 = vmatmul.bf16.gmra.mxu0 %v524
    %v538 = vpop.f32.mrf.mxu0
    %v539 = vadd.f32 0.0, %v538
    %v540 = vpop.f32.mrf.mxu0
    %v541 = vadd.f32 0.0, %v540
    %542 = vmatmul.bf16.gmra.mxu0 %v527
    %v543 = vpop.f32.mrf.mxu0
    %v544 = vadd.f32 0.0, %v543
    %v545 = vpop.f32.mrf.mxu0
    %v546 = vadd.f32 0.0, %v545
    %547 = vdwg.mxu0
    %v548 = vpack.c.bf16 %v541, %v539
    %v549 = vpack.c.bf16 %v546, %v544
    %v554 = vunpack.c.l.b16 %v292
    %v555 = vunpack.c.l.b16 %v293
    %v556 = vunpack.c.l.b16 %v294
    %v557 = vunpack.c.l.b16 %v295
    %v558 = vpack.c.b16 %v555, %v554
    %v559 = vpack.c.b16 %v557, %v556
    %v563 = vsel %vm310, %v548, 0
    %v566 = vsel %vm310, %v549, 0
    %568 = vmatpush.bf16.msra.mxu0 0
    %569 = vmatpush.bf16.msra.mxu0 0
    %570 = vmatpush.bf16.msra.mxu0 0
    %571 = vmatpush.bf16.msra.mxu0 0
    %572 = vmatpush.bf16.msra.mxu0 0
    %573 = vmatpush.bf16.msra.mxu0 0
    %574 = vmatpush.bf16.msra.mxu0 %v559
    %575 = vmatpush.bf16.msra.mxu0 %v558
    %576 = vmatmul.bf16.gmra.mxu0 %v563
    %v577 = vpop.f32.mrf.mxu0
    %v578 = vadd.f32 0.0, %v577
    %v579 = vpop.f32.mrf.mxu0
    %v580 = vadd.f32 0.0, %v579
    %581 = vmatmul.bf16.gmra.mxu0 %v566
    %v582 = vpop.f32.mrf.mxu0
    %v583 = vadd.f32 0.0, %v582
    %v584 = vpop.f32.mrf.mxu0
    %v585 = vadd.f32 0.0, %v584
    %586 = vdwg.mxu0
    %v591 = vunpack.c.l.b16 %v288
    %v592 = vunpack.c.l.b16 %v289
    %v593 = vunpack.c.l.b16 %v290
    %v594 = vunpack.c.l.b16 %v291
    %v595 = vpack.c.b16 %v592, %v591
    %v596 = vpack.c.b16 %v594, %v593
    %v600 = vsel %vm310, %v425, 0
    %v603 = vsel %vm310, %v426, 0
    %605 = vmatpush.bf16.msra.mxu0 0
    %606 = vmatpush.bf16.msra.mxu0 0
    %607 = vmatpush.bf16.msra.mxu0 0
    %608 = vmatpush.bf16.msra.mxu0 0
    %609 = vmatpush.bf16.msra.mxu0 0
    %610 = vmatpush.bf16.msra.mxu0 0
    %611 = vmatpush.bf16.msra.mxu0 %v596
    %612 = vmatpush.bf16.msra.mxu0 %v595
    %613 = vmatmul.bf16.gmra.mxu0 %v600
    %v614 = vpop.f32.mrf.mxu0
    %v615 = vadd.f32 %v578, %v614
    %v616 = vpop.f32.mrf.mxu0
    %v617 = vadd.f32 %v580, %v616
    %618 = vmatmul.bf16.gmra.mxu0 %v603
    %v619 = vpop.f32.mrf.mxu0
    %v620 = vadd.f32 %v583, %v619
    %v621 = vpop.f32.mrf.mxu0
    %v622 = vadd.f32 %v585, %v621
    %623 = vdwg.mxu0
    %v624 = vld [vmem:[%s7] sm:$0x1]
    %v626 = vperm.slane %v624, 0
    %v628 = vadd.f32 %v615, %v626
    %v629 = vadd.f32 %v617, %v626
    %v630 = vadd.f32 %v620, %v626
    %v631 = vadd.f32 %v622, %v626
    %v632 = vadd.f32 %v628, %v180
    %v633 = vadd.f32 %v629, %v181
    %v634 = vadd.f32 %v630, %v182
    %v635 = vadd.f32 %v631, %v183
    %v636 = vld [vmem:[%s8] sm:$0x1]
    %v637 = vld [vmem:[%s9] sm:$0x1]
    %v638 = vsel %vm74, %v632, 0.0
    %639 = vadd.xlane.f32.xlu0 %v638
    %v640 = vpop.xlane.xlu0 %639
    %v641 = vsel %vm74, %v633, 0.0
    %642 = vadd.xlane.f32.xlu0 %v641
    %v643 = vpop.xlane.xlu0 %642
    %v644 = vsel %vm74, %v634, 0.0
    %645 = vadd.xlane.f32.xlu0 %v644
    %v646 = vpop.xlane.xlu0 %645
    %v647 = vsel %vm74, %v635, 0.0
    %648 = vadd.xlane.f32.xlu0 %v647
    %v649 = vpop.xlane.xlu0 %648
    %v650 = vmul.f32 %v640, %v93
    %v651 = vmul.f32 %v643, %v93
    %v652 = vmul.f32 %v646, %v93
    %v653 = vmul.f32 %v649, %v93
    %v654 = vsub.f32 %v632, %v650
    %v655 = vsub.f32 %v633, %v651
    %v656 = vsub.f32 %v634, %v652
    %v657 = vsub.f32 %v635, %v653
    %v658 = vmul.f32 %v654, %v654
    %v659 = vmul.f32 %v655, %v655
    %v660 = vmul.f32 %v656, %v656
    %v661 = vmul.f32 %v657, %v657
    %v662 = vsel %vm74, %v658, 0.0
    %663 = vadd.xlane.f32.xlu0 %v662
    %v664 = vpop.xlane.xlu0 %663
    %v665 = vsel %vm74, %v659, 0.0
    %666 = vadd.xlane.f32.xlu0 %v665
    %v667 = vpop.xlane.xlu0 %666
    %v668 = vsel %vm74, %v660, 0.0
    %669 = vadd.xlane.f32.xlu0 %v668
    %v670 = vpop.xlane.xlu0 %669
    %v671 = vsel %vm74, %v661, 0.0
    %672 = vadd.xlane.f32.xlu0 %v671
    %v673 = vpop.xlane.xlu0 %672
    %v674 = vmul.f32 %v664, %v93
    %v675 = vmul.f32 %v667, %v93
    %v676 = vmul.f32 %v670, %v93
    %v677 = vmul.f32 %v673, %v93
    %v678 = vadd.f32 %v674, 1e-12
    %v679 = vadd.f32 %v675, 1e-12
    %v680 = vadd.f32 %v676, 1e-12
    %v681 = vadd.f32 %v677, 1e-12
    %v682 = vrsqrt.pop %v678
    %v683 = vmul.f32 %v682, %v678
    %v684 = vmul.f32 %v683, %v682
    %v685 = vmul.f32 0.5, %v684
    %v686 = vsub.f32 1.5, %v685
    %v687 = vmul.f32 %v682, %v686
    %vm688 = vweird.f32 %v678
    %vm689 = vweird.f32 %v682
    %vm690 = vmor %vm688, %vm689
    %v691 = vsel %vm690, %v682, %v687
    %v692 = vrsqrt.pop %v679
    %v693 = vmul.f32 %v692, %v679
    %v694 = vmul.f32 %v693, %v692
    %v695 = vmul.f32 0.5, %v694
    %v696 = vsub.f32 1.5, %v695
    %v697 = vmul.f32 %v692, %v696
    %vm698 = vweird.f32 %v679
    %vm699 = vweird.f32 %v692
    %vm700 = vmor %vm698, %vm699
    %v701 = vsel %vm700, %v692, %v697
    %v702 = vrsqrt.pop %v680
    %v703 = vmul.f32 %v702, %v680
    %v704 = vmul.f32 %v703, %v702
    %v705 = vmul.f32 0.5, %v704
    %v706 = vsub.f32 1.5, %v705
    %v707 = vmul.f32 %v702, %v706
    %vm708 = vweird.f32 %v680
    %vm709 = vweird.f32 %v702
    %vm710 = vmor %vm708, %vm709
    %v711 = vsel %vm710, %v702, %v707
    %v712 = vrsqrt.pop %v681
    %v713 = vmul.f32 %v712, %v681
    %v714 = vmul.f32 %v713, %v712
    %v715 = vmul.f32 0.5, %v714
    %v716 = vsub.f32 1.5, %v715
    %v717 = vmul.f32 %v712, %v716
    %vm718 = vweird.f32 %v681
    %vm719 = vweird.f32 %v712
    %vm720 = vmor %vm718, %vm719
    %v721 = vsel %vm720, %v712, %v717
    %v722 = vmul.f32 %v654, %v691
    %v723 = vmul.f32 %v655, %v701
    %v724 = vmul.f32 %v656, %v711
    %v725 = vmul.f32 %v657, %v721
    %v727 = vperm.slane %v636, 0
    %v729 = vmul.f32 %v722, %v727
    %v730 = vmul.f32 %v723, %v727
    %v731 = vmul.f32 %v724, %v727
    %v732 = vmul.f32 %v725, %v727
    %v734 = vperm.slane %v637, 0
    %v736 = vadd.f32 %v729, %v734
    %v737 = vadd.f32 %v730, %v734
    %v738 = vadd.f32 %v731, %v734
    %v739 = vadd.f32 %v732, %v734
    %v740 = vpack.c.bf16 %v737, %v736
    %v741 = vpack.c.bf16 %v739, %v738
    %v742 = vld [vmem:[%s10] sm:$0xf]
    %v743 = vld [vmem:[%s10 + $0x4] sm:$0xf]
    %v744 = vld [vmem:[%s10 + $0x8] sm:$0xf]
    %v745 = vld [vmem:[%s10 + $0xc] sm:$0xf]
    %v746 = vld [vmem:[%s10 + $0x10] sm:$0xf]
    %v747 = vld [vmem:[%s10 + $0x14] sm:$0xf]
    %v748 = vld [vmem:[%s10 + $0x18] sm:$0xf]
    %v749 = vld [vmem:[%s10 + $0x1c] sm:$0xf]
    %v750 = vld [vmem:[%s11] sm:$0x1]
    %v752 = vperm.slane %v750, 0
    %v762 = vunpack.c.l.b16 %v742
    %v763 = vunpack.c.l.b16 %v743
    %v764 = vunpack.c.l.b16 %v744
    %v765 = vunpack.c.l.b16 %v745
    %v766 = vunpack.c.l.b16 %v746
    %v767 = vunpack.c.l.b16 %v747
    %v768 = vunpack.c.l.b16 %v748
    %v769 = vunpack.c.l.b16 %v749
    %v770 = vpack.c.b16 %v763, %v762
    %v771 = vpack.c.b16 %v765, %v764
    %v772 = vpack.c.b16 %v767, %v766
    %v773 = vpack.c.b16 %v769, %v768
    %v779 = vsel %vm74, %v740, 0
    %v782 = vsel %vm74, %v741, 0
    %784 = vmatpush.bf16.msra.mxu0 0
    %785 = vmatpush.bf16.msra.mxu0 0
    %786 = vmatpush.bf16.msra.mxu0 0
    %787 = vmatpush.bf16.msra.mxu0 0
    %788 = vmatpush.bf16.msra.mxu0 %v773
    %789 = vmatpush.bf16.msra.mxu0 %v772
    %790 = vmatpush.bf16.msra.mxu0 %v771
    %791 = vmatpush.bf16.msra.mxu0 %v770
    %792 = vmatmul.bf16.gmra.mxu0 %v779
    %v793 = vpop.f32.mrf.mxu0
    %v794 = vadd.f32 %v752, %v793
    %v795 = vpop.f32.mrf.mxu0
    %v796 = vadd.f32 %v752, %v795
    %797 = vmatmul.bf16.gmra.mxu0 %v782
    %v798 = vpop.f32.mrf.mxu0
    %v799 = vadd.f32 %v752, %v798
    %v800 = vpop.f32.mrf.mxu0
    %v801 = vadd.f32 %v752, %v800
    %802 = vdwg.mxu0
    %v803 = vmul.f32 %v794, %v794
    %v804 = vmul.f32 %v796, %v796
    %v805 = vmul.f32 %v799, %v799
    %v806 = vmul.f32 %v801, %v801
    %v807 = vmul.f32 %v794, %v803
    %v808 = vmul.f32 %v796, %v804
    %v809 = vmul.f32 %v799, %v805
    %v810 = vmul.f32 %v801, %v806
    %v811 = vmul.f32 %v807, 0.044715
    %v812 = vmul.f32 %v808, 0.044715
    %v813 = vmul.f32 %v809, 0.044715
    %v814 = vmul.f32 %v810, 0.044715
    %v815 = vadd.f32 %v794, %v811
    %v816 = vadd.f32 %v796, %v812
    %v817 = vadd.f32 %v799, %v813
    %v818 = vadd.f32 %v801, %v814
    %v819 = vmul.f32 %v815, 0.7978846
    %v820 = vmul.f32 %v816, 0.7978846
    %v821 = vmul.f32 %v817, 0.7978846
    %v822 = vmul.f32 %v818, 0.7978846
    %v823 = vtanh.pop %v819
    %v824 = vtanh.pop %v820
    %v825 = vtanh.pop %v821
    %v826 = vtanh.pop %v822
    %v827 = vadd.f32 %v823, 1.0
    %v828 = vadd.f32 %v824, 1.0
    %v829 = vadd.f32 %v825, 1.0
    %v830 = vadd.f32 %v826, 1.0
    %v831 = vmul.f32 %v827, 0.5
    %v832 = vmul.f32 %v828, 0.5
    %v833 = vmul.f32 %v829, 0.5
    %v834 = vmul.f32 %v830, 0.5
    %v835 = vmul.f32 %v794, %v831
    %v836 = vmul.f32 %v796, %v832
    %v837 = vmul.f32 %v799, %v833
    %v838 = vmul.f32 %v801, %v834
    %v839 = vpack.c.bf16 %v836, %v835
    %v840 = vpack.c.bf16 %v838, %v837
    %v841 = vld [vmem:[%s12] sm:$0xf]
    %v842 = vld [vmem:[%s12 + $0x4] sm:$0xf]
    %v843 = vld [vmem:[%s12 + $0x8] sm:$0xf]
    %v844 = vld [vmem:[%s12 + $0xc] sm:$0xf]
    %v845 = vld [vmem:[%s12 + $0x10] sm:$0xf]
    %v846 = vld [vmem:[%s12 + $0x14] sm:$0xf]
    %v847 = vld [vmem:[%s12 + $0x18] sm:$0xf]
    %v848 = vld [vmem:[%s12 + $0x1c] sm:$0xf]
    %v849 = vld [vmem:[%s12 + $0x20] sm:$0xf]
    %v850 = vld [vmem:[%s12 + $0x24] sm:$0xf]
    %v851 = vld [vmem:[%s12 + $0x28] sm:$0xf]
    %v852 = vld [vmem:[%s12 + $0x2c] sm:$0xf]
    %v853 = vld [vmem:[%s12 + $0x30] sm:$0xf]
    %v854 = vld [vmem:[%s12 + $0x34] sm:$0xf]
    %v855 = vld [vmem:[%s12 + $0x38] sm:$0xf]
    %v856 = vld [vmem:[%s12 + $0x3c] sm:$0xf]
    %v857 = vld [vmem:[%s13] sm:$0x1]
    %v859 = vperm.slane %v857, 0
    %v877 = vunpack.c.l.b16 %v841
    %v878 = vunpack.c.l.b16 %v842
    %v879 = vunpack.c.l.b16 %v843
    %v880 = vunpack.c.l.b16 %v844
    %v881 = vunpack.c.l.b16 %v845
    %v882 = vunpack.c.l.b16 %v846
    %v883 = vunpack.c.l.b16 %v847
    %v884 = vunpack.c.l.b16 %v848
    %v885 = vunpack.c.l.b16 %v849
    %v886 = vunpack.c.l.b16 %v850
    %v887 = vunpack.c.l.b16 %v851
    %v888 = vunpack.c.l.b16 %v852
    %v889 = vunpack.c.l.b16 %v853
    %v890 = vunpack.c.l.b16 %v854
    %v891 = vunpack.c.l.b16 %v855
    %v892 = vunpack.c.l.b16 %v856
    %v893 = vpack.c.b16 %v878, %v877
    %v894 = vpack.c.b16 %v880, %v879
    %v895 = vpack.c.b16 %v882, %v881
    %v896 = vpack.c.b16 %v884, %v883
    %v897 = vpack.c.b16 %v886, %v885
    %v898 = vpack.c.b16 %v888, %v887
    %v899 = vpack.c.b16 %v890, %v889
    %v900 = vpack.c.b16 %v892, %v891
    %909 = vmatpush.bf16.msra.mxu0 %v900
    %910 = vmatpush.bf16.msra.mxu0 %v899
    %911 = vmatpush.bf16.msra.mxu0 %v898
    %912 = vmatpush.bf16.msra.mxu0 %v897
    %913 = vmatpush.bf16.msra.mxu0 %v896
    %914 = vmatpush.bf16.msra.mxu0 %v895
    %915 = vmatpush.bf16.msra.mxu0 %v894
    %916 = vmatpush.bf16.msra.mxu0 %v893
    %917 = vmatmul.bf16.gmra.mxu0 %v839
    %v918 = vpop.f32.mrf.mxu0
    %v919 = vadd.f32 %v859, %v918
    %v920 = vpop.f32.mrf.mxu0
    %v921 = vadd.f32 %v859, %v920
    %922 = vmatmul.bf16.gmra.mxu0 %v840
    %v923 = vpop.f32.mrf.mxu0
    %v924 = vadd.f32 %v859, %v923
    %v925 = vpop.f32.mrf.mxu0
    %v926 = vadd.f32 %v859, %v925
    %927 = vdwg.mxu0
    %v928 = vadd.f32 %v919, %v736
    %v929 = vadd.f32 %v921, %v737
    %v930 = vadd.f32 %v924, %v738
    %v931 = vadd.f32 %v926, %v739
    %v932 = vld [vmem:[%s14] sm:$0x1]
    %v933 = vld [vmem:[%s15] sm:$0x1]
    %v934 = vsel %vm74, %v928, 0.0
    %935 = vadd.xlane.f32.xlu0 %v934
    %v936 = vpop.xlane.xlu0 %935
    %v937 = vsel %vm74, %v929, 0.0
    %938 = vadd.xlane.f32.xlu0 %v937
    %v939 = vpop.xlane.xlu0 %938
    %v940 = vsel %vm74, %v930, 0.0
    %941 = vadd.xlane.f32.xlu0 %v940
    %v942 = vpop.xlane.xlu0 %941
    %v943 = vsel %vm74, %v931, 0.0
    %944 = vadd.xlane.f32.xlu0 %v943
    %v945 = vpop.xlane.xlu0 %944
    %v946 = vmul.f32 %v936, %v93
    %v947 = vmul.f32 %v939, %v93
    %v948 = vmul.f32 %v942, %v93
    %v949 = vmul.f32 %v945, %v93
    %v950 = vsub.f32 %v928, %v946
    %v951 = vsub.f32 %v929, %v947
    %v952 = vsub.f32 %v930, %v948
    %v953 = vsub.f32 %v931, %v949
    %v954 = vmul.f32 %v950, %v950
    %v955 = vmul.f32 %v951, %v951
    %v956 = vmul.f32 %v952, %v952
    %v957 = vmul.f32 %v953, %v953
    %v958 = vsel %vm74, %v954, 0.0
    %959 = vadd.xlane.f32.xlu0 %v958
    %v960 = vpop.xlane.xlu0 %959
    %v961 = vsel %vm74, %v955, 0.0
    %962 = vadd.xlane.f32.xlu0 %v961
    %v963 = vpop.xlane.xlu0 %962
    %v964 = vsel %vm74, %v956, 0.0
    %965 = vadd.xlane.f32.xlu0 %v964
    %v966 = vpop.xlane.xlu0 %965
    %v967 = vsel %vm74, %v957, 0.0
    %968 = vadd.xlane.f32.xlu0 %v967
    %v969 = vpop.xlane.xlu0 %968
    %v970 = vmul.f32 %v960, %v93
    %v971 = vmul.f32 %v963, %v93
    %v972 = vmul.f32 %v966, %v93
    %v973 = vmul.f32 %v969, %v93
    %v974 = vadd.f32 %v970, 1e-12
    %v975 = vadd.f32 %v971, 1e-12
    %v976 = vadd.f32 %v972, 1e-12
    %v977 = vadd.f32 %v973, 1e-12
    %v978 = vrsqrt.pop %v974
    %v979 = vmul.f32 %v978, %v974
    %v980 = vmul.f32 %v979, %v978
    %v981 = vmul.f32 0.5, %v980
    %v982 = vsub.f32 1.5, %v981
    %v983 = vmul.f32 %v978, %v982
    %vm984 = vweird.f32 %v974
    %vm985 = vweird.f32 %v978
    %vm986 = vmor %vm984, %vm985
    %v987 = vsel %vm986, %v978, %v983
    %v988 = vrsqrt.pop %v975
    %v989 = vmul.f32 %v988, %v975
    %v990 = vmul.f32 %v989, %v988
    %v991 = vmul.f32 0.5, %v990
    %v992 = vsub.f32 1.5, %v991
    %v993 = vmul.f32 %v988, %v992
    %vm994 = vweird.f32 %v975
    %vm995 = vweird.f32 %v988
    %vm996 = vmor %vm994, %vm995
    %v997 = vsel %vm996, %v988, %v993
    %v998 = vrsqrt.pop %v976
    %v999 = vmul.f32 %v998, %v976
    %v1000 = vmul.f32 %v999, %v998
    %v1001 = vmul.f32 0.5, %v1000
    %v1002 = vsub.f32 1.5, %v1001
    %v1003 = vmul.f32 %v998, %v1002
    %vm1004 = vweird.f32 %v976
    %vm1005 = vweird.f32 %v998
    %vm1006 = vmor %vm1004, %vm1005
    %v1007 = vsel %vm1006, %v998, %v1003
    %v1008 = vrsqrt.pop %v977
    %v1009 = vmul.f32 %v1008, %v977
    %v1010 = vmul.f32 %v1009, %v1008
    %v1011 = vmul.f32 0.5, %v1010
    %v1012 = vsub.f32 1.5, %v1011
    %v1013 = vmul.f32 %v1008, %v1012
    %vm1014 = vweird.f32 %v977
    %vm1015 = vweird.f32 %v1008
    %vm1016 = vmor %vm1014, %vm1015
    %v1017 = vsel %vm1016, %v1008, %v1013
    %v1018 = vmul.f32 %v950, %v987
    %v1019 = vmul.f32 %v951, %v997
    %v1020 = vmul.f32 %v952, %v1007
    %v1021 = vmul.f32 %v953, %v1017
    %v1023 = vperm.slane %v932, 0
    %v1025 = vmul.f32 %v1018, %v1023
    %v1026 = vmul.f32 %v1019, %v1023
    %v1027 = vmul.f32 %v1020, %v1023
    %v1028 = vmul.f32 %v1021, %v1023
    %v1030 = vperm.slane %v933, 0
    %v1032 = vadd.f32 %v1025, %v1030
    %v1033 = vadd.f32 %v1026, %v1030
    %v1034 = vadd.f32 %v1027, %v1030
    %v1035 = vadd.f32 %v1028, %v1030
    %v1036 = vpack.c.bf16 %v1033, %v1032
    %v1037 = vpack.c.bf16 %v1035, %v1034
    %s1038 = scalar_lea.vmem %s4, 64
    %v1039 = vld [vmem:[%s1038] sm:$0xff]
    %v1040 = vld [vmem:[%s1038 + $0x8] sm:$0xff]
    %v1041 = vld [vmem:[%s1038 + $0x10] sm:$0xff]
    %v1042 = vld [vmem:[%s1038 + $0x18] sm:$0xff]
    %v1043 = vld [vmem:[%s1038 + $0x20] sm:$0xff]
    %v1044 = vld [vmem:[%s1038 + $0x28] sm:$0xff]
    %v1045 = vld [vmem:[%s1038 + $0x30] sm:$0xff]
    %v1046 = vld [vmem:[%s1038 + $0x38] sm:$0xff]
    %s1047 = scalar_lea.vmem %s5, 2
    %v1048 = vld [vmem:[%s1047] sm:$0x3]
    %v1050 = vperm.slane %v1048, 0
    %v1051 = vperm.slane %v1048, 1
    %v1062 = vunpack.c.l.b16 %v1039
    %v1063 = vunpack.c.h.b16 %v1039
    %v1064 = vunpack.c.l.b16 %v1040
    %v1065 = vunpack.c.h.b16 %v1040
    %v1066 = vunpack.c.l.b16 %v1041
    %v1067 = vunpack.c.h.b16 %v1041
    %v1068 = vunpack.c.l.b16 %v1042
    %v1069 = vunpack.c.h.b16 %v1042
    %v1070 = vunpack.c.l.b16 %v1043
    %v1071 = vunpack.c.h.b16 %v1043
    %v1072 = vunpack.c.l.b16 %v1044
    %v1073 = vunpack.c.h.b16 %v1044
    %v1074 = vunpack.c.l.b16 %v1045
    %v1075 = vunpack.c.h.b16 %v1045
    %v1076 = vunpack.c.l.b16 %v1046
    %v1077 = vunpack.c.h.b16 %v1046
    %v1078 = vpack.c.b16 %v1064, %v1062
    %v1079 = vpack.c.b16 %v1065, %v1063
    %v1080 = vpack.c.b16 %v1068, %v1066
    %v1081 = vpack.c.b16 %v1069, %v1067
    %v1082 = vpack.c.b16 %v1072, %v1070
    %v1083 = vpack.c.b16 %v1073, %v1071
    %v1084 = vpack.c.b16 %v1076, %v1074
    %v1085 = vpack.c.b16 %v1077, %v1075
    %v1095 = vsel %vm74, %v1036, 0
    %v1098 = vsel %vm74, %v1037, 0
    %1100 = vmatpush.bf16.msra.mxu0 0
    %1101 = vmatpush.bf16.msra.mxu0 0
    %1102 = vmatpush.bf16.msra.mxu0 0
    %1103 = vmatpush.bf16.msra.mxu0 0
    %1104 = vmatpush.bf16.msra.mxu0 %v1084
    %1105 = vmatpush.bf16.msra.mxu0 %v1082
    %1106 = vmatpush.bf16.msra.mxu0 %v1080
    %1107 = vmatpush.bf16.msra.mxu0 %v1078
    %1108 = vmatmul.bf16.gmra.mxu0 %v1095
    %v1109 = vpop.f32.mrf.mxu0
    %v1110 = vadd.f32 %v1050, %v1109
    %v1111 = vpop.f32.mrf.mxu0
    %v1112 = vadd.f32 %v1050, %v1111
    %1113 = vmatmul.bf16.gmra.mxu0 %v1098
    %v1114 = vpop.f32.mrf.mxu0
    %v1115 = vadd.f32 %v1050, %v1114
    %v1116 = vpop.f32.mrf.mxu0
    %v1117 = vadd.f32 %v1050, %v1116
    %1118 = vdwg.mxu0
    %1119 = vmatpush.bf16.msra.mxu0 0
    %1120 = vmatpush.bf16.msra.mxu0 0
    %1121 = vmatpush.bf16.msra.mxu0 0
    %1122 = vmatpush.bf16.msra.mxu0 0
    %1123 = vmatpush.bf16.msra.mxu0 %v1085
    %1124 = vmatpush.bf16.msra.mxu0 %v1083
    %1125 = vmatpush.bf16.msra.mxu0 %v1081
    %1126 = vmatpush.bf16.msra.mxu0 %v1079
    %1127 = vmatmul.bf16.gmra.mxu0 %v1095
    %v1128 = vpop.f32.mrf.mxu0
    %v1129 = vadd.f32 %v1051, %v1128
    %v1130 = vpop.f32.mrf.mxu0
    %v1131 = vadd.f32 %v1051, %v1130
    %1132 = vmatmul.bf16.gmra.mxu0 %v1098
    %v1133 = vpop.f32.mrf.mxu0
    %v1134 = vadd.f32 %v1051, %v1133
    %v1135 = vpop.f32.mrf.mxu0
    %v1136 = vadd.f32 %v1051, %v1135
    %1137 = vdwg.mxu0
    %v1138 = vpack.c.bf16 %v1129, %v1110
    %v1139 = vpack.c.bf16 %v1131, %v1112
    %v1140 = vpack.c.bf16 %v1134, %v1115
    %v1141 = vpack.c.bf16 %v1136, %v1117
    %s1142 = scalar_lea.vmem %s6, 32
    %v1143 = vld [vmem:[%s1142] sm:$0xf]
    %v1144 = vld [vmem:[%s1142 + $0x4] sm:$0xf]
    %v1145 = vld [vmem:[%s1142 + $0x8] sm:$0xf]
    %v1146 = vld [vmem:[%s1142 + $0xc] sm:$0xf]
    %v1147 = vld [vmem:[%s1142 + $0x10] sm:$0xf]
    %v1148 = vld [vmem:[%s1142 + $0x14] sm:$0xf]
    %v1149 = vld [vmem:[%s1142 + $0x18] sm:$0xf]
    %v1150 = vld [vmem:[%s1142 + $0x1c] sm:$0xf]
    %v1155 = vunpack.c.l.b16 %v1138
    %v1156 = vunpack.c.l.b16 %v1139
    %v1157 = vunpack.c.l.b16 %v1140
    %v1158 = vunpack.c.l.b16 %v1141
    %v1159 = vpack.c.b16 %v1156, %v1155
    %v1160 = vpack.c.b16 %v1158, %v1157
    %1161 = vrot.lane.b32.xlu0 %v1159, 64
    %v1162 = vpop.permute.xlu0 %1161
    %1163 = vrot.lane.b32.xlu0 %v1160, 64
    %v1164 = vpop.permute.xlu0 %1163
    %v1166 = vsel %vm310, %v1159, 0
    %v1169 = vsel %vm310, %v1160, 0
    %v1172 = vsel %vm310, %v1162, 0
    %v1175 = vsel %vm310, %v1164, 0
    %1177 = vmatpush.bf16.xpose.msra.mxu0 0
    %1178 = vmatpush.bf16.xpose.msra.mxu0 0
    %1179 = vmatpush.bf16.xpose.msra.mxu0 0
    %1180 = vmatpush.bf16.xpose.msra.mxu0 0
    %1181 = vmatpush.bf16.xpose.msra.mxu0 0
    %1182 = vmatpush.bf16.xpose.msra.mxu0 0
    %1183 = vmatpush.bf16.xpose.msra.mxu0 %v1175
    %1184 = vmatpush.bf16.xpose.msra.mxu0 %v1172
    %1185 = vmatmul.bf16.gmra.mxu0 %v1166
    %v1186 = vpop.f32.mrf.mxu0
    %v1187 = vadd.f32 %v64, %v1186
    %v1188 = vpop.f32.mrf.mxu0
    %v1189 = vadd.f32 %v65, %v1188
    %1190 = vmatmul.bf16.gmra.mxu0 %v1169
    %v1191 = vpop.f32.mrf.mxu0
    %v1192 = vadd.f32 %v66, %v1191
    %v1193 = vpop.f32.mrf.mxu0
    %v1194 = vadd.f32 %v67, %v1193
    %1195 = vdwg.mxu0
    %v1196 = vsel %vm310, %v1187, -inf
    %1197 = vmax.xlane.f32.xlu0 %v1196
    %v1198 = vpop.xlane.xlu0 %1197
    %v1199 = vsel %vm310, %v1189, -inf
    %1200 = vmax.xlane.f32.xlu0 %v1199
    %v1201 = vpop.xlane.xlu0 %1200
    %v1202 = vsel %vm310, %v1192, -inf
    %1203 = vmax.xlane.f32.xlu0 %v1202
    %v1204 = vpop.xlane.xlu0 %1203
    %v1205 = vsel %vm310, %v1194, -inf
    %1206 = vmax.xlane.f32.xlu0 %v1205
    %v1207 = vpop.xlane.xlu0 %1206
    %v1208 = vsub.f32 %v1187, %v1198
    %v1209 = vsub.f32 %v1189, %v1201
    %v1210 = vsub.f32 %v1192, %v1204
    %v1211 = vsub.f32 %v1194, %v1207
    %v1212 = vmul.f32 %v1208, 1.442695
    %v1213 = vpow.pop %v1212
    %v1214 = vmul.f32 %v1209, 1.442695
    %v1215 = vpow.pop %v1214
    %v1216 = vmul.f32 %v1210, 1.442695
    %v1217 = vpow.pop %v1216
    %v1218 = vmul.f32 %v1211, 1.442695
    %v1219 = vpow.pop %v1218
    %v1220 = vsel %vm310, %v1213, 0.0
    %1221 = vadd.xlane.f32.xlu0 %v1220
    %v1222 = vpop.xlane.xlu0 %1221
    %v1223 = vsel %vm310, %v1215, 0.0
    %1224 = vadd.xlane.f32.xlu0 %v1223
    %v1225 = vpop.xlane.xlu0 %1224
    %v1226 = vsel %vm310, %v1217, 0.0
    %1227 = vadd.xlane.f32.xlu0 %v1226
    %v1228 = vpop.xlane.xlu0 %1227
    %v1229 = vsel %vm310, %v1219, 0.0
    %1230 = vadd.xlane.f32.xlu0 %v1229
    %v1231 = vpop.xlane.xlu0 %1230
    %v1232 = vrcp.pop %v1222
    %v1233 = vrcp.pop %v1225
    %v1234 = vrcp.pop %v1228
    %v1235 = vrcp.pop %v1231
    %v1236 = vmul.f32 %v1213, %v1232
    %v1237 = vmul.f32 %v1215, %v1233
    %v1238 = vmul.f32 %v1217, %v1234
    %v1239 = vmul.f32 %v1219, %v1235
    %s1240 = scalar_lea.vmem %s20, 64
    %1241 = vst.msk [vmem:[%s1240] sm:$0xff] %vm310, %v1236
    %1242 = vst.msk [vmem:[%s1240 + $0x8] sm:$0xff] %vm310, %v1237
    %1243 = vst.msk [vmem:[%s1240 + $0x10] sm:$0xff] %vm310, %v1238
    %1244 = vst.msk [vmem:[%s1240 + $0x18] sm:$0xff] %vm310, %v1239
    %v1245 = vpack.c.bf16 %v1237, %v1236
    %v1246 = vpack.c.bf16 %v1239, %v1238
    %v1247 = vunpack.c.h.b16 %v1138
    %v1248 = vunpack.c.h.b16 %v1139
    %v1249 = vunpack.c.h.b16 %v1140
    %v1250 = vunpack.c.h.b16 %v1141
    %v1251 = vpack.c.b16 %v1248, %v1247
    %v1252 = vpack.c.b16 %v1250, %v1249
    %v1256 = vsel %vm310, %v1245, 0
    %v1259 = vsel %vm310, %v1246, 0
    %1261 = vmatpush.bf16.msra.mxu0 0
    %1262 = vmatpush.bf16.msra.mxu0 0
    %1263 = vmatpush.bf16.msra.mxu0 0
    %1264 = vmatpush.bf16.msra.mxu0 0
    %1265 = vmatpush.bf16.msra.mxu0 0
    %1266 = vmatpush.bf16.msra.mxu0 0
    %1267 = vmatpush.bf16.msra.mxu0 %v1252
    %1268 = vmatpush.bf16.msra.mxu0 %v1251
    %1269 = vmatmul.bf16.gmra.mxu0 %v1256
    %v1270 = vpop.f32.mrf.mxu0
    %v1271 = vadd.f32 0.0, %v1270
    %v1272 = vpop.f32.mrf.mxu0
    %v1273 = vadd.f32 0.0, %v1272
    %1274 = vmatmul.bf16.gmra.mxu0 %v1259
    %v1275 = vpop.f32.mrf.mxu0
    %v1276 = vadd.f32 0.0, %v1275
    %v1277 = vpop.f32.mrf.mxu0
    %v1278 = vadd.f32 0.0, %v1277
    %1279 = vdwg.mxu0
    %v1280 = vpack.c.bf16 %v1273, %v1271
    %v1281 = vpack.c.bf16 %v1278, %v1276
    %1282 = vrot.lane.b32.xlu0 %v1159, 96
    %v1283 = vpop.permute.xlu0 %1282
    %1284 = vrot.lane.b32.xlu0 %v1160, 96
    %v1285 = vpop.permute.xlu0 %1284
    %1286 = vrot.lane.b32.xlu0 %v1159, 32
    %v1287 = vpop.permute.xlu0 %1286
    %1288 = vrot.lane.b32.xlu0 %v1160, 32
    %v1289 = vpop.permute.xlu0 %1288
    %v1291 = vsel %vm310, %v1283, 0
    %v1294 = vsel %vm310, %v1285, 0
    %v1297 = vsel %vm310, %v1287, 0
    %v1300 = vsel %vm310, %v1289, 0
    %1302 = vmatpush.bf16.xpose.msra.mxu0 0
    %1303 = vmatpush.bf16.xpose.msra.mxu0 0
    %1304 = vmatpush.bf16.xpose.msra.mxu0 0
    %1305 = vmatpush.bf16.xpose.msra.mxu0 0
    %1306 = vmatpush.bf16.xpose.msra.mxu0 0
    %1307 = vmatpush.bf16.xpose.msra.mxu0 0
    %1308 = vmatpush.bf16.xpose.msra.mxu0 %v1300
    %1309 = vmatpush.bf16.xpose.msra.mxu0 %v1297
    %1310 = vmatmul.bf16.gmra.mxu0 %v1291
    %v1311 = vpop.f32.mrf.mxu0
    %v1312 = vadd.f32 %v64, %v1311
    %v1313 = vpop.f32.mrf.mxu0
    %v1314 = vadd.f32 %v65, %v1313
    %1315 = vmatmul.bf16.gmra.mxu0 %v1294
    %v1316 = vpop.f32.mrf.mxu0
    %v1317 = vadd.f32 %v66, %v1316
    %v1318 = vpop.f32.mrf.mxu0
    %v1319 = vadd.f32 %v67, %v1318
    %1320 = vdwg.mxu0
    %v1321 = vsel %vm310, %v1312, -inf
    %1322 = vmax.xlane.f32.xlu0 %v1321
    %v1323 = vpop.xlane.xlu0 %1322
    %v1324 = vsel %vm310, %v1314, -inf
    %1325 = vmax.xlane.f32.xlu0 %v1324
    %v1326 = vpop.xlane.xlu0 %1325
    %v1327 = vsel %vm310, %v1317, -inf
    %1328 = vmax.xlane.f32.xlu0 %v1327
    %v1329 = vpop.xlane.xlu0 %1328
    %v1330 = vsel %vm310, %v1319, -inf
    %1331 = vmax.xlane.f32.xlu0 %v1330
    %v1332 = vpop.xlane.xlu0 %1331
    %v1333 = vsub.f32 %v1312, %v1323
    %v1334 = vsub.f32 %v1314, %v1326
    %v1335 = vsub.f32 %v1317, %v1329
    %v1336 = vsub.f32 %v1319, %v1332
    %v1337 = vmul.f32 %v1333, 1.442695
    %v1338 = vpow.pop %v1337
    %v1339 = vmul.f32 %v1334, 1.442695
    %v1340 = vpow.pop %v1339
    %v1341 = vmul.f32 %v1335, 1.442695
    %v1342 = vpow.pop %v1341
    %v1343 = vmul.f32 %v1336, 1.442695
    %v1344 = vpow.pop %v1343
    %v1345 = vsel %vm310, %v1338, 0.0
    %1346 = vadd.xlane.f32.xlu0 %v1345
    %v1347 = vpop.xlane.xlu0 %1346
    %v1348 = vsel %vm310, %v1340, 0.0
    %1349 = vadd.xlane.f32.xlu0 %v1348
    %v1350 = vpop.xlane.xlu0 %1349
    %v1351 = vsel %vm310, %v1342, 0.0
    %1352 = vadd.xlane.f32.xlu0 %v1351
    %v1353 = vpop.xlane.xlu0 %1352
    %v1354 = vsel %vm310, %v1344, 0.0
    %1355 = vadd.xlane.f32.xlu0 %v1354
    %v1356 = vpop.xlane.xlu0 %1355
    %v1357 = vrcp.pop %v1347
    %v1358 = vrcp.pop %v1350
    %v1359 = vrcp.pop %v1353
    %v1360 = vrcp.pop %v1356
    %v1361 = vmul.f32 %v1338, %v1357
    %v1362 = vmul.f32 %v1340, %v1358
    %v1363 = vmul.f32 %v1342, %v1359
    %v1364 = vmul.f32 %v1344, %v1360
    %s1365 = scalar_lea.vmem %s20, 96
    %1366 = vst.msk [vmem:[%s1365] sm:$0xff] %vm310, %v1361
    %1367 = vst.msk [vmem:[%s1365 + $0x8] sm:$0xff] %vm310, %v1362
    %1368 = vst.msk [vmem:[%s1365 + $0x10] sm:$0xff] %vm310, %v1363
    %1369 = vst.msk [vmem:[%s1365 + $0x18] sm:$0xff] %vm310, %v1364
    %v1370 = vpack.c.bf16 %v1362, %v1361
    %v1371 = vpack.c.bf16 %v1364, %v1363
    %1372 = vrot.lane.b32.xlu0 %v1251, 96
    %v1373 = vpop.permute.xlu0 %1372
    %1374 = vrot.lane.b32.xlu0 %v1252, 96
    %v1375 = vpop.permute.xlu0 %1374
    %v1379 = vsel %vm310, %v1370, 0
    %v1382 = vsel %vm310, %v1371, 0
    %1384 = vmatpush.bf16.msra.mxu0 0
    %1385 = vmatpush.bf16.msra.mxu0 0
    %1386 = vmatpush.bf16.msra.mxu0 0
    %1387 = vmatpush.bf16.msra.mxu0 0
    %1388 = vmatpush.bf16.msra.mxu0 0
    %1389 = vmatpush.bf16.msra.mxu0 0
    %1390 = vmatpush.bf16.msra.mxu0 %v1375
    %1391 = vmatpush.bf16.msra.mxu0 %v1373
    %1392 = vmatmul.bf16.gmra.mxu0 %v1379
    %v1393 = vpop.f32.mrf.mxu0
    %v1394 = vadd.f32 0.0, %v1393
    %v1395 = vpop.f32.mrf.mxu0
    %v1396 = vadd.f32 0.0, %v1395
    %1397 = vmatmul.bf16.gmra.mxu0 %v1382
    %v1398 = vpop.f32.mrf.mxu0
    %v1399 = vadd.f32 0.0, %v1398
    %v1400 = vpop.f32.mrf.mxu0
    %v1401 = vadd.f32 0.0, %v1400
    %1402 = vdwg.mxu0
    %v1403 = vpack.c.bf16 %v1396, %v1394
    %v1404 = vpack.c.bf16 %v1401, %v1399
    %v1409 = vunpack.c.l.b16 %v1147
    %v1410 = vunpack.c.l.b16 %v1148
    %v1411 = vunpack.c.l.b16 %v1149
    %v1412 = vunpack.c.l.b16 %v1150
    %v1413 = vpack.c.b16 %v1410, %v1409
    %v1414 = vpack.c.b16 %v1412, %v1411
    %v1418 = vsel %vm310, %v1403, 0
    %v1421 = vsel %vm310, %v1404, 0
    %1423 = vmatpush.bf16.msra.mxu0 0
    %1424 = vmatpush.bf16.msra.mxu0 0
    %1425 = vmatpush.bf16.msra.mxu0 0
    %1426 = vmatpush.bf16.msra.mxu0 0
    %1427 = vmatpush.bf16.msra.mxu0 0
    %1428 = vmatpush.bf16.msra.mxu0 0
    %1429 = vmatpush.bf16.msra.mxu0 %v1414
    %1430 = vmatpush.bf16.msra.mxu0 %v1413
    %1431 = vmatmul.bf16.gmra.mxu0 %v1418
    %v1432 = vpop.f32.mrf.mxu0
    %v1433 = vadd.f32 0.0, %v1432
    %v1434 = vpop.f32.mrf.mxu0
    %v1435 = vadd.f32 0.0, %v1434
    %1436 = vmatmul.bf16.gmra.mxu0 %v1421
    %v1437 = vpop.f32.mrf.mxu0
    %v1438 = vadd.f32 0.0, %v1437
    %v1439 = vpop.f32.mrf.mxu0
    %v1440 = vadd.f32 0.0, %v1439
    %1441 = vdwg.mxu0
    %v1446 = vunpack.c.l.b16 %v1143
    %v1447 = vunpack.c.l.b16 %v1144
    %v1448 = vunpack.c.l.b16 %v1145
    %v1449 = vunpack.c.l.b16 %v1146
    %v1450 = vpack.c.b16 %v1447, %v1446
    %v1451 = vpack.c.b16 %v1449, %v1448
    %v1455 = vsel %vm310, %v1280, 0
    %v1458 = vsel %vm310, %v1281, 0
    %1460 = vmatpush.bf16.msra.mxu0 0
    %1461 = vmatpush.bf16.msra.mxu0 0
    %1462 = vmatpush.bf16.msra.mxu0 0
    %1463 = vmatpush.bf16.msra.mxu0 0
    %1464 = vmatpush.bf16.msra.mxu0 0
    %1465 = vmatpush.bf16.msra.mxu0 0
    %1466 = vmatpush.bf16.msra.mxu0 %v1451
    %1467 = vmatpush.bf16.msra.mxu0 %v1450
    %1468 = vmatmul.bf16.gmra.mxu0 %v1455
    %v1469 = vpop.f32.mrf.mxu0
    %v1470 = vadd.f32 %v1433, %v1469
    %v1471 = vpop.f32.mrf.mxu0
    %v1472 = vadd.f32 %v1435, %v1471
    %1473 = vmatmul.bf16.gmra.mxu0 %v1458
    %v1474 = vpop.f32.mrf.mxu0
    %v1475 = vadd.f32 %v1438, %v1474
    %v1476 = vpop.f32.mrf.mxu0
    %v1477 = vadd.f32 %v1440, %v1476
    %1478 = vdwg.mxu0
    %s1479 = scalar_lea.vmem %s7, 1
    %v1480 = vld [vmem:[%s1479] sm:$0x1]
    %v1482 = vperm.slane %v1480, 0
    %v1484 = vadd.f32 %v1470, %v1482
    %v1485 = vadd.f32 %v1472, %v1482
    %v1486 = vadd.f32 %v1475, %v1482
    %v1487 = vadd.f32 %v1477, %v1482
    %v1488 = vadd.f32 %v1484, %v1032
    %v1489 = vadd.f32 %v1485, %v1033
    %v1490 = vadd.f32 %v1486, %v1034
    %v1491 = vadd.f32 %v1487, %v1035
    %s1492 = scalar_lea.vmem %s8, 1
    %v1493 = vld [vmem:[%s1492] sm:$0x1]
    %s1494 = scalar_lea.vmem %s9, 1
    %v1495 = vld [vmem:[%s1494] sm:$0x1]
    %v1496 = vsel %vm74, %v1488, 0.0
    %1497 = vadd.xlane.f32.xlu0 %v1496
    %v1498 = vpop.xlane.xlu0 %1497
    %v1499 = vsel %vm74, %v1489, 0.0
    %1500 = vadd.xlane.f32.xlu0 %v1499
    %v1501 = vpop.xlane.xlu0 %1500
    %v1502 = vsel %vm74, %v1490, 0.0
    %1503 = vadd.xlane.f32.xlu0 %v1502
    %v1504 = vpop.xlane.xlu0 %1503
    %v1505 = vsel %vm74, %v1491, 0.0
    %1506 = vadd.xlane.f32.xlu0 %v1505
    %v1507 = vpop.xlane.xlu0 %1506
    %v1508 = vmul.f32 %v1498, %v93
    %v1509 = vmul.f32 %v1501, %v93
    %v1510 = vmul.f32 %v1504, %v93
    %v1511 = vmul.f32 %v1507, %v93
    %v1512 = vsub.f32 %v1488, %v1508
    %v1513 = vsub.f32 %v1489, %v1509
    %v1514 = vsub.f32 %v1490, %v1510
    %v1515 = vsub.f32 %v1491, %v1511
    %v1516 = vmul.f32 %v1512, %v1512
    %v1517 = vmul.f32 %v1513, %v1513
    %v1518 = vmul.f32 %v1514, %v1514
    %v1519 = vmul.f32 %v1515, %v1515
    %v1520 = vsel %vm74, %v1516, 0.0
    %1521 = vadd.xlane.f32.xlu0 %v1520
    %v1522 = vpop.xlane.xlu0 %1521
    %v1523 = vsel %vm74, %v1517, 0.0
    %1524 = vadd.xlane.f32.xlu0 %v1523
    %v1525 = vpop.xlane.xlu0 %1524
    %v1526 = vsel %vm74, %v1518, 0.0
    %1527 = vadd.xlane.f32.xlu0 %v1526
    %v1528 = vpop.xlane.xlu0 %1527
    %v1529 = vsel %vm74, %v1519, 0.0
    %1530 = vadd.xlane.f32.xlu0 %v1529
    %v1531 = vpop.xlane.xlu0 %1530
    %v1532 = vmul.f32 %v1522, %v93
    %v1533 = vmul.f32 %v1525, %v93
    %v1534 = vmul.f32 %v1528, %v93
    %v1535 = vmul.f32 %v1531, %v93
    %v1536 = vadd.f32 %v1532, 1e-12
    %v1537 = vadd.f32 %v1533, 1e-12
    %v1538 = vadd.f32 %v1534, 1e-12
    %v1539 = vadd.f32 %v1535, 1e-12
    %v1540 = vrsqrt.pop %v1536
    %v1541 = vmul.f32 %v1540, %v1536
    %v1542 = vmul.f32 %v1541, %v1540
    %v1543 = vmul.f32 0.5, %v1542
    %v1544 = vsub.f32 1.5, %v1543
    %v1545 = vmul.f32 %v1540, %v1544
    %vm1546 = vweird.f32 %v1536
    %vm1547 = vweird.f32 %v1540
    %vm1548 = vmor %vm1546, %vm1547
    %v1549 = vsel %vm1548, %v1540, %v1545
    %v1550 = vrsqrt.pop %v1537
    %v1551 = vmul.f32 %v1550, %v1537
    %v1552 = vmul.f32 %v1551, %v1550
    %v1553 = vmul.f32 0.5, %v1552
    %v1554 = vsub.f32 1.5, %v1553
    %v1555 = vmul.f32 %v1550, %v1554
    %vm1556 = vweird.f32 %v1537
    %vm1557 = vweird.f32 %v1550
    %vm1558 = vmor %vm1556, %vm1557
    %v1559 = vsel %vm1558, %v1550, %v1555
    %v1560 = vrsqrt.pop %v1538
    %v1561 = vmul.f32 %v1560, %v1538
    %v1562 = vmul.f32 %v1561, %v1560
    %v1563 = vmul.f32 0.5, %v1562
    %v1564 = vsub.f32 1.5, %v1563
    %v1565 = vmul.f32 %v1560, %v1564
    %vm1566 = vweird.f32 %v1538
    %vm1567 = vweird.f32 %v1560
    %vm1568 = vmor %vm1566, %vm1567
    %v1569 = vsel %vm1568, %v1560, %v1565
    %v1570 = vrsqrt.pop %v1539
    %v1571 = vmul.f32 %v1570, %v1539
    %v1572 = vmul.f32 %v1571, %v1570
    %v1573 = vmul.f32 0.5, %v1572
    %v1574 = vsub.f32 1.5, %v1573
    %v1575 = vmul.f32 %v1570, %v1574
    %vm1576 = vweird.f32 %v1539
    %vm1577 = vweird.f32 %v1570
    %vm1578 = vmor %vm1576, %vm1577
    %v1579 = vsel %vm1578, %v1570, %v1575
    %v1580 = vmul.f32 %v1512, %v1549
    %v1581 = vmul.f32 %v1513, %v1559
    %v1582 = vmul.f32 %v1514, %v1569
    %v1583 = vmul.f32 %v1515, %v1579
    %v1585 = vperm.slane %v1493, 0
    %v1587 = vmul.f32 %v1580, %v1585
    %v1588 = vmul.f32 %v1581, %v1585
    %v1589 = vmul.f32 %v1582, %v1585
    %v1590 = vmul.f32 %v1583, %v1585
    %v1592 = vperm.slane %v1495, 0
    %v1594 = vadd.f32 %v1587, %v1592
    %v1595 = vadd.f32 %v1588, %v1592
    %v1596 = vadd.f32 %v1589, %v1592
    %v1597 = vadd.f32 %v1590, %v1592
    %v1598 = vpack.c.bf16 %v1595, %v1594
    %v1599 = vpack.c.bf16 %v1597, %v1596
    %s1600 = scalar_lea.vmem %s10, 32
    %v1601 = vld [vmem:[%s1600] sm:$0xf]
    %v1602 = vld [vmem:[%s1600 + $0x4] sm:$0xf]
    %v1603 = vld [vmem:[%s1600 + $0x8] sm:$0xf]
    %v1604 = vld [vmem:[%s1600 + $0xc] sm:$0xf]
    %v1605 = vld [vmem:[%s1600 + $0x10] sm:$0xf]
    %v1606 = vld [vmem:[%s1600 + $0x14] sm:$0xf]
    %v1607 = vld [vmem:[%s1600 + $0x18] sm:$0xf]
    %v1608 = vld [vmem:[%s1600 + $0x1c] sm:$0xf]
    %s1609 = scalar_lea.vmem %s11, 1
    %v1610 = vld [vmem:[%s1609] sm:$0x1]
    %v1612 = vperm.slane %v1610, 0
    %v1622 = vunpack.c.l.b16 %v1601
    %v1623 = vunpack.c.l.b16 %v1602
    %v1624 = vunpack.c.l.b16 %v1603
    %v1625 = vunpack.c.l.b16 %v1604
    %v1626 = vunpack.c.l.b16 %v1605
    %v1627 = vunpack.c.l.b16 %v1606
    %v1628 = vunpack.c.l.b16 %v1607
    %v1629 = vunpack.c.l.b16 %v1608
    %v1630 = vpack.c.b16 %v1623, %v1622
    %v1631 = vpack.c.b16 %v1625, %v1624
    %v1632 = vpack.c.b16 %v1627, %v1626
    %v1633 = vpack.c.b16 %v1629, %v1628
    %v1639 = vsel %vm74, %v1598, 0
    %v1642 = vsel %vm74, %v1599, 0
    %1644 = vmatpush.bf16.msra.mxu0 0
    %1645 = vmatpush.bf16.msra.mxu0 0
    %1646 = vmatpush.bf16.msra.mxu0 0
    %1647 = vmatpush.bf16.msra.mxu0 0
    %1648 = vmatpush.bf16.msra.mxu0 %v1633
    %1649 = vmatpush.bf16.msra.mxu0 %v1632
    %1650 = vmatpush.bf16.msra.mxu0 %v1631
    %1651 = vmatpush.bf16.msra.mxu0 %v1630
    %1652 = vmatmul.bf16.gmra.mxu0 %v1639
    %v1653 = vpop.f32.mrf.mxu0
    %v1654 = vadd.f32 %v1612, %v1653
    %v1655 = vpop.f32.mrf.mxu0
    %v1656 = vadd.f32 %v1612, %v1655
    %1657 = vmatmul.bf16.gmra.mxu0 %v1642
    %v1658 = vpop.f32.mrf.mxu0
    %v1659 = vadd.f32 %v1612, %v1658
    %v1660 = vpop.f32.mrf.mxu0
    %v1661 = vadd.f32 %v1612, %v1660
    %1662 = vdwg.mxu0
    %v1663 = vmul.f32 %v1654, %v1654
    %v1664 = vmul.f32 %v1656, %v1656
    %v1665 = vmul.f32 %v1659, %v1659
    %v1666 = vmul.f32 %v1661, %v1661
    %v1667 = vmul.f32 %v1654, %v1663
    %v1668 = vmul.f32 %v1656, %v1664
    %v1669 = vmul.f32 %v1659, %v1665
    %v1670 = vmul.f32 %v1661, %v1666
    %v1671 = vmul.f32 %v1667, 0.044715
    %v1672 = vmul.f32 %v1668, 0.044715
    %v1673 = vmul.f32 %v1669, 0.044715
    %v1674 = vmul.f32 %v1670, 0.044715
    %v1675 = vadd.f32 %v1654, %v1671
    %v1676 = vadd.f32 %v1656, %v1672
    %v1677 = vadd.f32 %v1659, %v1673
    %v1678 = vadd.f32 %v1661, %v1674
    %v1679 = vmul.f32 %v1675, 0.7978846
    %v1680 = vmul.f32 %v1676, 0.7978846
    %v1681 = vmul.f32 %v1677, 0.7978846
    %v1682 = vmul.f32 %v1678, 0.7978846
    %v1683 = vtanh.pop %v1679
    %v1684 = vtanh.pop %v1680
    %v1685 = vtanh.pop %v1681
    %v1686 = vtanh.pop %v1682
    %v1687 = vadd.f32 %v1683, 1.0
    %v1688 = vadd.f32 %v1684, 1.0
    %v1689 = vadd.f32 %v1685, 1.0
    %v1690 = vadd.f32 %v1686, 1.0
    %v1691 = vmul.f32 %v1687, 0.5
    %v1692 = vmul.f32 %v1688, 0.5
    %v1693 = vmul.f32 %v1689, 0.5
    %v1694 = vmul.f32 %v1690, 0.5
    %v1695 = vmul.f32 %v1654, %v1691
    %v1696 = vmul.f32 %v1656, %v1692
    %v1697 = vmul.f32 %v1659, %v1693
    %v1698 = vmul.f32 %v1661, %v1694
    %v1699 = vpack.c.bf16 %v1696, %v1695
    %v1700 = vpack.c.bf16 %v1698, %v1697
    %s1701 = scalar_lea.vmem %s12, 64
    %v1702 = vld [vmem:[%s1701] sm:$0xf]
    %v1703 = vld [vmem:[%s1701 + $0x4] sm:$0xf]
    %v1704 = vld [vmem:[%s1701 + $0x8] sm:$0xf]
    %v1705 = vld [vmem:[%s1701 + $0xc] sm:$0xf]
    %v1706 = vld [vmem:[%s1701 + $0x10] sm:$0xf]
    %v1707 = vld [vmem:[%s1701 + $0x14] sm:$0xf]
    %v1708 = vld [vmem:[%s1701 + $0x18] sm:$0xf]
    %v1709 = vld [vmem:[%s1701 + $0x1c] sm:$0xf]
    %v1710 = vld [vmem:[%s1701 + $0x20] sm:$0xf]
    %v1711 = vld [vmem:[%s1701 + $0x24] sm:$0xf]
    %v1712 = vld [vmem:[%s1701 + $0x28] sm:$0xf]
    %v1713 = vld [vmem:[%s1701 + $0x2c] sm:$0xf]
    %v1714 = vld [vmem:[%s1701 + $0x30] sm:$0xf]
    %v1715 = vld [vmem:[%s1701 + $0x34] sm:$0xf]
    %v1716 = vld [vmem:[%s1701 + $0x38] sm:$0xf]
    %v1717 = vld [vmem:[%s1701 + $0x3c] sm:$0xf]
    %s1718 = scalar_lea.vmem %s13, 1
    %v1719 = vld [vmem:[%s1718] sm:$0x1]
    %v1721 = vperm.slane %v1719, 0
    %v1739 = vunpack.c.l.b16 %v1702
    %v1740 = vunpack.c.l.b16 %v1703
    %v1741 = vunpack.c.l.b16 %v1704
    %v1742 = vunpack.c.l.b16 %v1705
    %v1743 = vunpack.c.l.b16 %v1706
    %v1744 = vunpack.c.l.b16 %v1707
    %v1745 = vunpack.c.l.b16 %v1708
    %v1746 = vunpack.c.l.b16 %v1709
    %v1747 = vunpack.c.l.b16 %v1710
    %v1748 = vunpack.c.l.b16 %v1711
    %v1749 = vunpack.c.l.b16 %v1712
    %v1750 = vunpack.c.l.b16 %v1713
    %v1751 = vunpack.c.l.b16 %v1714
    %v1752 = vunpack.c.l.b16 %v1715
    %v1753 = vunpack.c.l.b16 %v1716
    %v1754 = vunpack.c.l.b16 %v1717
    %v1755 = vpack.c.b16 %v1740, %v1739
    %v1756 = vpack.c.b16 %v1742, %v1741
    %v1757 = vpack.c.b16 %v1744, %v1743
    %v1758 = vpack.c.b16 %v1746, %v1745
    %v1759 = vpack.c.b16 %v1748, %v1747
    %v1760 = vpack.c.b16 %v1750, %v1749
    %v1761 = vpack.c.b16 %v1752, %v1751
    %v1762 = vpack.c.b16 %v1754, %v1753
    %1771 = vmatpush.bf16.msra.mxu0 %v1762
    %1772 = vmatpush.bf16.msra.mxu0 %v1761
    %1773 = vmatpush.bf16.msra.mxu0 %v1760
    %1774 = vmatpush.bf16.msra.mxu0 %v1759
    %1775 = vmatpush.bf16.msra.mxu0 %v1758
    %1776 = vmatpush.bf16.msra.mxu0 %v1757
    %1777 = vmatpush.bf16.msra.mxu0 %v1756
    %1778 = vmatpush.bf16.msra.mxu0 %v1755
    %1779 = vmatmul.bf16.gmra.mxu0 %v1699
    %v1780 = vpop.f32.mrf.mxu0
    %v1781 = vadd.f32 %v1721, %v1780
    %v1782 = vpop.f32.mrf.mxu0
    %v1783 = vadd.f32 %v1721, %v1782
    %1784 = vmatmul.bf16.gmra.mxu0 %v1700
    %v1785 = vpop.f32.mrf.mxu0
    %v1786 = vadd.f32 %v1721, %v1785
    %v1787 = vpop.f32.mrf.mxu0
    %v1788 = vadd.f32 %v1721, %v1787
    %1789 = vdwg.mxu0
    %v1790 = vadd.f32 %v1781, %v1594
    %v1791 = vadd.f32 %v1783, %v1595
    %v1792 = vadd.f32 %v1786, %v1596
    %v1793 = vadd.f32 %v1788, %v1597
    %s1794 = scalar_lea.vmem %s14, 1
    %v1795 = vld [vmem:[%s1794] sm:$0x1]
    %s1796 = scalar_lea.vmem %s15, 1
    %v1797 = vld [vmem:[%s1796] sm:$0x1]
    %v1798 = vsel %vm74, %v1790, 0.0
    %1799 = vadd.xlane.f32.xlu0 %v1798
    %v1800 = vpop.xlane.xlu0 %1799
    %v1801 = vsel %vm74, %v1791, 0.0
    %1802 = vadd.xlane.f32.xlu0 %v1801
    %v1803 = vpop.xlane.xlu0 %1802
    %v1804 = vsel %vm74, %v1792, 0.0
    %1805 = vadd.xlane.f32.xlu0 %v1804
    %v1806 = vpop.xlane.xlu0 %1805
    %v1807 = vsel %vm74, %v1793, 0.0
    %1808 = vadd.xlane.f32.xlu0 %v1807
    %v1809 = vpop.xlane.xlu0 %1808
    %v1810 = vmul.f32 %v1800, %v93
    %v1811 = vmul.f32 %v1803, %v93
    %v1812 = vmul.f32 %v1806, %v93
    %v1813 = vmul.f32 %v1809, %v93
    %v1814 = vsub.f32 %v1790, %v1810
    %v1815 = vsub.f32 %v1791, %v1811
    %v1816 = vsub.f32 %v1792, %v1812
    %v1817 = vsub.f32 %v1793, %v1813
    %v1818 = vmul.f32 %v1814, %v1814
    %v1819 = vmul.f32 %v1815, %v1815
    %v1820 = vmul.f32 %v1816, %v1816
    %v1821 = vmul.f32 %v1817, %v1817
    %v1822 = vsel %vm74, %v1818, 0.0
    %1823 = vadd.xlane.f32.xlu0 %v1822
    %v1824 = vpop.xlane.xlu0 %1823
    %v1825 = vsel %vm74, %v1819, 0.0
    %1826 = vadd.xlane.f32.xlu0 %v1825
    %v1827 = vpop.xlane.xlu0 %1826
    %v1828 = vsel %vm74, %v1820, 0.0
    %1829 = vadd.xlane.f32.xlu0 %v1828
    %v1830 = vpop.xlane.xlu0 %1829
    %v1831 = vsel %vm74, %v1821, 0.0
    %1832 = vadd.xlane.f32.xlu0 %v1831
    %v1833 = vpop.xlane.xlu0 %1832
    %v1834 = vmul.f32 %v1824, %v93
    %v1835 = vmul.f32 %v1827, %v93
    %v1836 = vmul.f32 %v1830, %v93
    %v1837 = vmul.f32 %v1833, %v93
    %v1838 = vadd.f32 %v1834, 1e-12
    %v1839 = vadd.f32 %v1835, 1e-12
    %v1840 = vadd.f32 %v1836, 1e-12
    %v1841 = vadd.f32 %v1837, 1e-12
    %v1842 = vrsqrt.pop %v1838
    %v1843 = vmul.f32 %v1842, %v1838
    %v1844 = vmul.f32 %v1843, %v1842
    %v1845 = vmul.f32 0.5, %v1844
    %v1846 = vsub.f32 1.5, %v1845
    %v1847 = vmul.f32 %v1842, %v1846
    %vm1848 = vweird.f32 %v1838
    %vm1849 = vweird.f32 %v1842
    %vm1850 = vmor %vm1848, %vm1849
    %v1851 = vsel %vm1850, %v1842, %v1847
    %v1852 = vrsqrt.pop %v1839
    %v1853 = vmul.f32 %v1852, %v1839
    %v1854 = vmul.f32 %v1853, %v1852
    %v1855 = vmul.f32 0.5, %v1854
    %v1856 = vsub.f32 1.5, %v1855
    %v1857 = vmul.f32 %v1852, %v1856
    %vm1858 = vweird.f32 %v1839
    %vm1859 = vweird.f32 %v1852
    %vm1860 = vmor %vm1858, %vm1859
    %v1861 = vsel %vm1860, %v1852, %v1857
    %v1862 = vrsqrt.pop %v1840
    %v1863 = vmul.f32 %v1862, %v1840
    %v1864 = vmul.f32 %v1863, %v1862
    %v1865 = vmul.f32 0.5, %v1864
    %v1866 = vsub.f32 1.5, %v1865
    %v1867 = vmul.f32 %v1862, %v1866
    %vm1868 = vweird.f32 %v1840
    %vm1869 = vweird.f32 %v1862
    %vm1870 = vmor %vm1868, %vm1869
    %v1871 = vsel %vm1870, %v1862, %v1867
    %v1872 = vrsqrt.pop %v1841
    %v1873 = vmul.f32 %v1872, %v1841
    %v1874 = vmul.f32 %v1873, %v1872
    %v1875 = vmul.f32 0.5, %v1874
    %v1876 = vsub.f32 1.5, %v1875
    %v1877 = vmul.f32 %v1872, %v1876
    %vm1878 = vweird.f32 %v1841
    %vm1879 = vweird.f32 %v1872
    %vm1880 = vmor %vm1878, %vm1879
    %v1881 = vsel %vm1880, %v1872, %v1877
    %v1882 = vmul.f32 %v1814, %v1851
    %v1883 = vmul.f32 %v1815, %v1861
    %v1884 = vmul.f32 %v1816, %v1871
    %v1885 = vmul.f32 %v1817, %v1881
    %v1887 = vperm.slane %v1795, 0
    %v1889 = vmul.f32 %v1882, %v1887
    %v1890 = vmul.f32 %v1883, %v1887
    %v1891 = vmul.f32 %v1884, %v1887
    %v1892 = vmul.f32 %v1885, %v1887
    %v1894 = vperm.slane %v1797, 0
    %v1896 = vadd.f32 %v1889, %v1894
    %v1897 = vadd.f32 %v1890, %v1894
    %v1898 = vadd.f32 %v1891, %v1894
    %v1899 = vadd.f32 %v1892, %v1894
    %1900 = vst.msk [vmem:[#allocation2] sm:$0xff] %vm74, %v1896
    %1901 = vst.msk [vmem:[#allocation2 + $0x8] sm:$0xff] %vm74, %v1897
    %1902 = vst.msk [vmem:[#allocation2 + $0x10] sm:$0xff] %vm74, %v1898
    %1903 = vst.msk [vmem:[#allocation2 + $0x18] sm:$0xff] %vm74, %v1899
    %v1904 = vpack.c.bf16 %v1897, %v1896
    %v1905 = vpack.c.bf16 %v1899, %v1898
    %v1906 = vld [vmem:[%s16] sm:$0xf]
    %v1907 = vld [vmem:[%s16 + $0x4] sm:$0xf]
    %v1908 = vld [vmem:[%s16 + $0x8] sm:$0xf]
    %v1909 = vld [vmem:[%s16 + $0xc] sm:$0xf]
    %v1910 = vld [vmem:[%s16 + $0x10] sm:$0xf]
    %v1911 = vld [vmem:[%s16 + $0x14] sm:$0xf]
    %v1912 = vld [vmem:[%s16 + $0x18] sm:$0xf]
    %v1913 = vld [vmem:[%s16 + $0x1c] sm:$0xf]
    %v1914 = vld [vmem:[%s17] sm:$0x1]
    %v1916 = vperm.slane %v1914, 0
    %v1926 = vunpack.c.l.b16 %v1906
    %v1927 = vunpack.c.l.b16 %v1907
    %v1928 = vunpack.c.l.b16 %v1908
    %v1929 = vunpack.c.l.b16 %v1909
    %v1930 = vunpack.c.l.b16 %v1910
    %v1931 = vunpack.c.l.b16 %v1911
    %v1932 = vunpack.c.l.b16 %v1912
    %v1933 = vunpack.c.l.b16 %v1913
    %v1934 = vpack.c.b16 %v1927, %v1926
    %v1935 = vpack.c.b16 %v1929, %v1928
    %v1936 = vpack.c.b16 %v1931, %v1930
    %v1937 = vpack.c.b16 %v1933, %v1932
    %v1943 = vsel %vm74, %v1904, 0
    %v1946 = vsel %vm74, %v1905, 0
    %1948 = vmatpush.bf16.msra.mxu0 0
    %1949 = vmatpush.bf16.msra.mxu0 0
    %1950 = vmatpush.bf16.msra.mxu0 0
    %1951 = vmatpush.bf16.msra.mxu0 0
    %1952 = vmatpush.bf16.msra.mxu0 %v1937
    %1953 = vmatpush.bf16.msra.mxu0 %v1936
    %1954 = vmatpush.bf16.msra.mxu0 %v1935
    %1955 = vmatpush.bf16.msra.mxu0 %v1934
    %1956 = vmatmul.bf16.gmra.mxu0 %v1943
    %v1957 = vpop.f32.mrf.mxu0
    %v1958 = vadd.f32 %v1916, %v1957
    %v1959 = vpop.f32.mrf.mxu0
    %v1960 = vadd.f32 %v1916, %v1959
    %1961 = vmatmul.bf16.gmra.mxu0 %v1946
    %v1962 = vpop.f32.mrf.mxu0
    %v1963 = vadd.f32 %v1916, %v1962
    %v1964 = vpop.f32.mrf.mxu0
    %v1965 = vadd.f32 %v1916, %v1964
    %1966 = vdwg.mxu0
    %v1967 = vtanh.pop %v1958
    %v1968 = vtanh.pop %v1960
    %v1969 = vtanh.pop %v1963
    %v1970 = vtanh.pop %v1965
    %1971 = vst.msk [vmem:[%s19] sm:$0xff] %vm74, %v1967
    %1972 = vst.msk [vmem:[%s19 + $0x8] sm:$0xff] %vm74, %v1968
    %1973 = vst.msk [vmem:[%s19 + $0x10] sm:$0xff] %vm74, %v1969
    %1974 = vst.msk [vmem:[%s19 + $0x18] sm:$0xff] %vm74, %v1970
    // Predicated region
    $region74: #{bert_forward.1} parent=1 // pred_check
      _
    $region75: #{bert_forward.1} parent=1 // pred_check_branch
      %1976 = sbr.rel (0) target = $region77
    $region76: #{bert_forward.1} parent=1 // pred_region
      %1978 = vsyncadd [#allocation3], 0
      %s1979 = sshll.u32 [#allocation2], 4
      %s1980 = int_to_ptr.vmem [resolvable:$true] %s1979
      %s1981 = sshll.u32 %s18, 4
      %s1982 = int_to_ptr.hbm [resolvable:$true] %s1981
      %1987 = dma.vmem_to_hbm [thread:$0]  %s1980, 512, %s1982, [#allocation3], 128, 128, 8
    $region77: #{bert_forward.1} parent=1 // pred_fallthru
      _
    // Predicated region
    $region78: #{bert_forward.1} parent=1 // pred_check
      _
    $region79: #{bert_forward.1} parent=1 // pred_check_branch
      %1989 = sbr.rel (0) target = $region81
    $region80: #{bert_forward.1} parent=1 // pred_region
      _
    $region81: #{bert_forward.1} parent=1 // pred_fallthru
      _
    // Predicated region
    $region82: #{bert_forward.1} parent=1 // pred_check
      _
    $region83: #{bert_forward.1} parent=1 // pred_check_branch
      %1991 = sbr.rel (0) target = $region85
    $region84: #{bert_forward.1} parent=1 // pred_region
      _
    $region85: #{bert_forward.1} parent=1 // pred_fallthru
      _
    // Predicated region
    $region86: #{bert_forward.1} parent=1 // pred_check
      _
    $region87: #{bert_forward.1} parent=1 // pred_check_branch
      %1993 = sbr.rel (0) target = $region89
    $region88: #{bert_forward.1} parent=1 // pred_region
      %1995 = dma.done [#allocation3], 512
    $region89: #{bert_forward.1} parent=1 // pred_fallthru
      _
    // Predicated region
    $region90: #{bert_forward.1} parent=1 // pred_check
      _
    $region91: #{bert_forward.1} parent=1 // pred_check_branch
      %1997 = sbr.rel (0) target = $region93
    $region92: #{bert_forward.1} parent=1 // pred_region
      _
    $region93: #{bert_forward.1} parent=1 // pred_fallthru
      _
    // Predicated region
    $region94: #{bert_forward.1} parent=1 // pred_check
      _
    $region95: #{bert_forward.1} parent=1 // pred_check_branch
      %1999 = sbr.rel (0) target = $region97
    $region96: #{bert_forward.1} parent=1 // pred_region
      _
    $region97: #{bert_forward.1} parent=1 // pred_fallthru
      _
    %2000 = vsyncpa [#allocation3], 1

</llo_original>
